<compile_context>
chip_gen: v7x
topology: tpu7x:2x2x1
jax: 0.10.0
libtpu: 0.0.40
codegen_flags: <defaults>
</compile_context>

<pallas_src>
import functools

import jax
import jax.numpy as jnp
from jax.experimental import pallas as pl
from jax.experimental.pallas import tpu as pltpu


# ------------------------------ Pallas kernel -------------------------------

def _up_double_conv_kernel(x1_ref, x2_ref, p_up_ref, m_up_ref, p_sh_ref,
                           m1a_ref, m1b_ref, m2_ref,
                           pool1_ref, g1_ref, b1_ref,
                           pool2_ref, g2_ref, b2_ref,
                           o_ref, *, inv_count):
    """Fully VMEM-resident Up.forward on lane-dense (N*H, W*C) slabs."""

    def dot(a, b):
        return jnp.dot(a, b, preferred_element_type=jnp.float32)

    def conv3x3(taps):
        # taps: list of (input slab (NH, W*Ci), per-H-tap weight ref (3, W*Ci, W*Co)).
        # M[kh] does the full 3-tap conv along W (incl. zero SAME padding);
        # p_sh[kh] shifts rows by kh-1 with zero fill (SAME padding along H,
        # block-diagonal per batch so rows never bleed across images).
        acc = None
        for kh in range(3):
            t = None
            for slab, m_ref in taps:
                c = dot(slab, m_ref[kh])
                t = c if t is None else t + c
            if kh != 1:
                t = dot(p_sh_ref[kh], t)
            acc = t if acc is None else acc + t
        return acc                                           # (NH, W*Co)

    def bn_relu(y, pool_ref, g_ref, b_ref):
        # Training-mode BatchNorm2d (biased variance, eps=1e-5) + ReLU.
        # pool[j, j'] = 1 iff slab columns j and j' hold the same channel, so
        # colsum @ pool spreads per-channel totals back onto every column.
        s = jnp.sum(y, axis=0, keepdims=True)                # (1, W*C)
        sq = jnp.sum(y * y, axis=0, keepdims=True)           # single pass sum/sumsq
        mean = dot(s, pool_ref[...]) * inv_count
        var = dot(sq, pool_ref[...]) * inv_count - mean * mean
        scale = jax.lax.rsqrt(var + 1e-5) * g_ref[...]       # EUP rsqrt
        shift = b_ref[...] - mean * scale
        return jnp.maximum(y * scale + shift, 0.0)

    # Bilinear x2 upsample of x1 (align_corners=True) as two MXU matmuls.
    x1_up = dot(dot(p_up_ref[...], x1_ref[...]), m_up_ref[...])   # (NH, W*C1)

    # conv1 over torch.cat([x2, x1_up], dim=1): split by channel group
    # (linearity), so the concat never has to be materialized.
    # Conv biases are intentionally dropped (cancelled by BN mean subtraction).
    y1 = conv3x3([(x2_ref[...], m1a_ref), (x1_up, m1b_ref)])      # (NH, W*Cmid)
    h1 = bn_relu(y1, pool1_ref, g1_ref, b1_ref)

    y2 = conv3x3([(h1, m2_ref)])                                  # (NH, W*Cout)
    o_ref[...] = bn_relu(y2, pool2_ref, g2_ref, b2_ref)           # (32,128) unmasked store


# ------------------------------ wrapper helpers ------------------------------

def _full_spec(arr):
    nd = arr.ndim
    return pl.BlockSpec(arr.shape, lambda i, _nd=nd: (0,) * _nd)


def _linear_interp_matrix(n_in, n_out):
    """(n_out, n_in) 1-D linear interpolation matrix, align_corners=True."""
    if n_in == 1:
        return jnp.ones((n_out, 1), jnp.float32)
    pos = jnp.arange(n_out, dtype=jnp.float32) * (n_in - 1) / (n_out - 1)
    lo = jnp.clip(jnp.floor(pos), 0, n_in - 2).astype(jnp.int32)
    frac = pos - lo.astype(jnp.float32)
    rows = jnp.arange(n_out)
    m = jnp.zeros((n_out, n_in), jnp.float32)
    m = m.at[rows, lo].add(1.0 - frac)
    m = m.at[rows, lo + 1].add(frac)
    return m


def _conv_row_mats(w_hwio, width):
    """Block-Toeplitz expansion of a 3x3 HWIO weight: (3, width*Cin, width*Cout).
    M[kh] applies the 3-tap conv along W (SAME zero padding) of H-tap kh to a
    lane-dense row slab."""
    mats = []
    for kh in range(3):
        m = 0.0
        for kw in range(3):
            band = jnp.eye(width, width, k=1 - kw, dtype=jnp.float32)
            m = m + jnp.kron(band, w_hwio[kh, kw].astype(jnp.float32))
        mats.append(m)
    return jnp.stack(mats)


def up_forward(x1_nchw, x2_nchw, p):
    """Pallas Up.forward. Inputs/outputs are NCHW to match PyTorch."""
    f32 = jnp.float32
    N, C1, H1, W1 = x1_nchw.shape
    _, C2, H, W = x2_nchw.shape
    assert (H, W) == (2 * H1, 2 * W1)
    Cmid = p["w1"].shape[-1]
    Cout = p["w2"].shape[-1]

    # NCHW -> NHWC -> lane-dense row slabs: rows = (n, h), cols = (w, c).
    x1_2d = jnp.transpose(x1_nchw, (0, 2, 3, 1)).reshape(N * H1, W1 * C1)
    x2_2d = jnp.transpose(x2_nchw, (0, 2, 3, 1)).reshape(N * H, W * C2)

    # Bilinear x2 upsample (align_corners=True) expressed as two matmuls.
    u_h = _linear_interp_matrix(H1, H)                     # (H, H1)
    u_w = _linear_interp_matrix(W1, W)                     # (W, W1)
    p_up = jnp.kron(jnp.eye(N, dtype=f32), u_h)            # (N*H, N*H1)
    m_up = jnp.kron(u_w.T, jnp.eye(C1, dtype=f32))         # (W1*C1, W*C1)

    # Per-H-tap row shift matrices (zero SAME padding along H, per batch).
    p_shift = jnp.stack([jnp.kron(jnp.eye(N, dtype=f32),
                                  jnp.eye(H, H, k=kh - 1, dtype=f32))
                         for kh in range(3)])              # (3, N*H, N*H)

    # conv1 split over the concat: first C2 input channels come from x2,
    # the last C1 from the upsampled x1 (== torch.cat([x2, x1], dim=1)).
    m1a = _conv_row_mats(p["w1"][:, :, :C2, :], W)         # (3, W*C2, W*Cmid)
    m1b = _conv_row_mats(p["w1"][:, :, C2:, :], W)         # (3, W*C1, W*Cmid)
    m2 = _conv_row_mats(p["w2"], W)                        # (3, W*Cmid, W*Cout)

    # BN helpers: POOL[j, j'] = 1 iff slab columns share a channel; gamma/beta
    # pre-broadcast to slab columns.
    pool1 = jnp.kron(jnp.ones((W, W), f32), jnp.eye(Cmid, dtype=f32))
    pool2 = jnp.kron(jnp.ones((W, W), f32), jnp.eye(Cout, dtype=f32))
    g1c = jnp.tile(p["g1"].astype(f32), W).reshape(1, W * Cmid)
    b1c = jnp.tile(p["be1"].astype(f32), W).reshape(1, W * Cmid)
    g2c = jnp.tile(p["g2"].astype(f32), W).reshape(1, W * Cout)
    b2c = jnp.tile(p["be2"].astype(f32), W).reshape(1, W * Cout)

    args = (x1_2d, x2_2d, p_up, m_up, p_shift, m1a, m1b, m2,
            pool1, g1c, b1c, pool2, g2c, b2c)

    kernel = functools.partial(_up_double_conv_kernel,
                               inv_count=1.0 / float(N * H * W))
    out_slab = pl.pallas_call(
        kernel,
        out_shape=jax.ShapeDtypeStruct((N * H, W * Cout), f32),
        grid=(1,),
        in_specs=[_full_spec(a) for a in args],
        out_specs=pl.BlockSpec((N * H, W * Cout), lambda i: (0, 0)),
        compiler_params=pltpu.CompilerParams(
            dimension_semantics=("arbitrary",)),
    )(*args)

    # (N*H, W*Cout) lane-dense slab == flattened NHWC; back to NCHW.
    return jnp.transpose(out_slab.reshape(N, H, W, Cout), (0, 3, 1, 2))


# ------------------------ pure-JAX reference (check) -------------------------

def _ref_up_forward(x1_nchw, x2_nchw, p):
    P = jax.lax.Precision.HIGHEST
    N, C1, H1, W1 = x1_nchw.shape
    H, W = 2 * H1, 2 * W1
    u_h = _linear_interp_matrix(H1, H)
    u_w = _linear_interp_matrix(W1, W)

    x1 = jnp.transpose(x1_nchw, (0, 2, 3, 1)).astype(jnp.float32)
    x2 = jnp.transpose(x2_nchw, (0, 2, 3, 1)).astype(jnp.float32)
    x1u = jnp.einsum("ah,nhwc->nawc", u_h, x1, precision=P)
    x1u = jnp.einsum("bw,nawc->nabc", u_w, x1u, precision=P)
    x = jnp.concatenate([x2, x1u], axis=-1)          # torch.cat([x2, x1], dim=1)

    def conv(x, w, b):
        y = jax.lax.conv_general_dilated(
            x, w, (1, 1), "SAME",
            dimension_numbers=("NHWC", "HWIO", "NHWC"), precision=P)
        return y + b.reshape(1, 1, 1, -1)            # reference keeps the bias

    def bnrelu(y, g, be):
        m = jnp.mean(y, axis=(0, 1, 2), keepdims=True)
        v = jnp.mean((y - m) ** 2, axis=(0, 1, 2), keepdims=True)
        out = (y - m) * jax.lax.rsqrt(v + 1e-5) * g.reshape(1, 1, 1, -1) \
              + be.reshape(1, 1, 1, -1)
        return jnp.maximum(out, 0.0)

    y = bnrelu(conv(x, p["w1"], p["b1"]), p["g1"], p["be1"])
    y = bnrelu(conv(y, p["w2"], p["b2"]), p["g2"], p["be2"])
    return jnp.transpose(y, (0, 3, 1, 2))


# --------------------------------- main --------------------------------------

if __name__ == "__main__":
    # Up(in_channels=8, out_channels=8, bilinear=True):
    #   x1 (N, 4, 8, 8) --bilinear x2--> (N, 4, 16, 16)
    #   x = cat([x2, x1_up], dim=1): (N, 8, 16, 16)
    #   DoubleConv(8, 8, mid_channels=8 // 2 = 4)
    # TODO(synk): BatchNorm running-stat (momentum) buffer updates are a
    # training-time side effect and are not modeled; the forward output matches
    # train mode.
    N = 2
    C1, H1, W1 = 4, 8, 8            # x1 (decoder feature)
    C2, H, W = 4, 16, 16            # x2 (skip connection)
    Cin, Cmid, Cout = C1 + C2, (C1 + C2) // 2, 8

    key = jax.random.PRNGKey(0)
    k = jax.random.split(key, 10)

    params = {
        "w1": 0.1 * jax.random.normal(k[0], (3, 3, Cin, Cmid), jnp.float32),
        "b1": 0.1 * jax.random.normal(k[1], (Cmid,), jnp.float32),
        "g1": 1.0 + 0.1 * jax.random.normal(k[2], (Cmid,), jnp.float32),
        "be1": 0.1 * jax.random.normal(k[3], (Cmid,), jnp.float32),
        "w2": 0.1 * jax.random.normal(k[4], (3, 3, Cmid, Cout), jnp.float32),
        "b2": 0.1 * jax.random.normal(k[5], (Cout,), jnp.float32),
        "g2": 1.0 + 0.1 * jax.random.normal(k[6], (Cout,), jnp.float32),
        "be2": 0.1 * jax.random.normal(k[7], (Cout,), jnp.float32),
    }
    x1 = jax.random.normal(k[8], (N, C1, H1, W1), jnp.float32)   # PyTorch NCHW
    x2 = jax.random.normal(k[9], (N, C2, H, W), jnp.float32)

    out = jax.block_until_ready(jax.jit(up_forward)(x1, x2, params))
    ref = jax.block_until_ready(_ref_up_forward(x1, x2, params))

    assert out.shape == (N, Cout, H, W), out.shape
    # Tolerance covers MXU multi-pass f32 rounding inside the kernel vs the
    # HIGHEST-precision XLA reference; any algorithmic bug (wrong tap/channel
    # split/BN) produces O(1) errors, far above this bound.
    max_err = float(jnp.max(jnp.abs(out - ref)))
    assert jnp.allclose(out, ref, atol=2e-2, rtol=2e-2), max_err
    print("KERNEL_OK")
</pallas_src>

<mosaic_0001>
module attributes {stable_mosaic.version = 11 : i64} {
  func.func private @main(%arg0: i32) attributes {dimension_semantics = [#tpu.dimension_semantics<core_parallel>], iteration_bounds = array<i64: 2>, tpu.core_type = #tpu.core_type<sc_scalar_subcore>, window_params = []} {
    return
  }
}

module attributes {stable_mosaic.version = 11 : i64} {
  func.func private @main(%arg0: i32) attributes {dimension_semantics = [#tpu.dimension_semantics<core_parallel>], iteration_bounds = array<i64: 2>, tpu.core_type = #tpu.core_type<sc_scalar_subcore>, window_params = []} {
    return
  }
}

module attributes {stable_mosaic.version = 11 : i64} {
  func.func @_up_double_conv_kernel(%arg0: i32, %arg1: memref<16x32xf32, #tpu.memory_space<vmem>>, %arg2: memref<32x64xf32, #tpu.memory_space<vmem>>, %arg3: memref<32x16xf32, #tpu.memory_space<vmem>>, %arg4: memref<32x64xf32, #tpu.memory_space<vmem>>, %arg5: memref<3x32x32xf32, #tpu.memory_space<vmem>>, %arg6: memref<3x64x64xf32, #tpu.memory_space<vmem>>, %arg7: memref<3x64x64xf32, #tpu.memory_space<vmem>>, %arg8: memref<3x64x128xf32, #tpu.memory_space<vmem>>, %arg9: memref<64x64xf32, #tpu.memory_space<vmem>>, %arg10: memref<1x64xf32, #tpu.memory_space<vmem>>, %arg11: memref<1x64xf32, #tpu.memory_space<vmem>>, %arg12: memref<128x128xf32, #tpu.memory_space<vmem>>, %arg13: memref<1x128xf32, #tpu.memory_space<vmem>>, %arg14: memref<1x128xf32, #tpu.memory_space<vmem>>, %arg15: memref<32x128xf32, #tpu.memory_space<vmem>>) attributes {dimension_semantics = [#tpu.dimension_semantics<arbitrary>], iteration_bounds = array<i64: 1>, scalar_prefetch = 0 : i64, scratch_operands = 0 : i64, tpu.core_type = #tpu.core_type<tc>, window_params = [{pipeline_mode = #tpu.pipeline_mode<synchronous>, transform_indices = @transform_0, window_bounds = array<i64: 16, 32>}, {pipeline_mode = #tpu.pipeline_mode<synchronous>, transform_indices = @transform_1, window_bounds = array<i64: 32, 64>}, {pipeline_mode = #tpu.pipeline_mode<synchronous>, transform_indices = @transform_2, window_bounds = array<i64: 32, 16>}, {pipeline_mode = #tpu.pipeline_mode<synchronous>, transform_indices = @transform_3, window_bounds = array<i64: 32, 64>}, {pipeline_mode = #tpu.pipeline_mode<synchronous>, transform_indices = @transform_4, window_bounds = array<i64: 3, 32, 32>}, {pipeline_mode = #tpu.pipeline_mode<synchronous>, transform_indices = @transform_5, window_bounds = array<i64: 3, 64, 64>}, {pipeline_mode = #tpu.pipeline_mode<synchronous>, transform_indices = @transform_6, window_bounds = array<i64: 3, 64, 64>}, {pipeline_mode = #tpu.pipeline_mode<synchronous>, transform_indices = @transform_7, window_bounds = array<i64: 3, 64, 128>}, {pipeline_mode = #tpu.pipeline_mode<synchronous>, transform_indices = @transform_8, window_bounds = array<i64: 64, 64>}, {pipeline_mode = #tpu.pipeline_mode<synchronous>, transform_indices = @transform_9, window_bounds = array<i64: 1, 64>}, {pipeline_mode = #tpu.pipeline_mode<synchronous>, transform_indices = @transform_10, window_bounds = array<i64: 1, 64>}, {pipeline_mode = #tpu.pipeline_mode<synchronous>, transform_indices = @transform_11, window_bounds = array<i64: 128, 128>}, {pipeline_mode = #tpu.pipeline_mode<synchronous>, transform_indices = @transform_12, window_bounds = array<i64: 1, 128>}, {pipeline_mode = #tpu.pipeline_mode<synchronous>, transform_indices = @transform_13, window_bounds = array<i64: 1, 128>}, {pipeline_mode = #tpu.pipeline_mode<synchronous>, transform_indices = @transform_14, window_bounds = array<i64: 32, 128>}]} {
    %c0 = arith.constant 0 : index
    %c0_0 = arith.constant 0 : index
    %0 = vector.load %arg3[%c0, %c0_0] : memref<32x16xf32, #tpu.memory_space<vmem>>, vector<32x16xf32>
    %c0_1 = arith.constant 0 : index
    %c0_2 = arith.constant 0 : index
    %1 = vector.load %arg1[%c0_1, %c0_2] : memref<16x32xf32, #tpu.memory_space<vmem>>, vector<16x32xf32>
    %cst = arith.constant dense<0.000000e+00> : vector<32x32xf32>
    %2 = tpu.matmul %0, %1, %cst {dimension_numbers = #tpu.dot_dimension_numbers<[1], [0], [0], [1], [0, 0, 1, 1], [], []>} : vector<32x16xf32>, vector<16x32xf32>, vector<32x32xf32> -> vector<32x32xf32>
    %c0_3 = arith.constant 0 : index
    %c0_4 = arith.constant 0 : index
    %3 = vector.load %arg4[%c0_3, %c0_4] : memref<32x64xf32, #tpu.memory_space<vmem>>, vector<32x64xf32>
    %cst_5 = arith.constant dense<0.000000e+00> : vector<32x64xf32>
    %4 = tpu.matmul %2, %3, %cst_5 {dimension_numbers = #tpu.dot_dimension_numbers<[1], [0], [0], [1], [0, 0, 1, 1], [], []>} : vector<32x32xf32>, vector<32x64xf32>, vector<32x64xf32> -> vector<32x64xf32>
    %c0_6 = arith.constant 0 : index
    %c0_7 = arith.constant 0 : index
    %5 = vector.load %arg2[%c0_6, %c0_7] : memref<32x64xf32, #tpu.memory_space<vmem>>, vector<32x64xf32>
    %c0_8 = arith.constant 0 : index
    %c0_9 = arith.constant 0 : index
    %c0_10 = arith.constant 0 : index
    %6 = vector.load %arg6[%c0_8, %c0_9, %c0_10] : memref<3x64x64xf32, #tpu.memory_space<vmem>>, vector<1x64x64xf32>
    %7 = vector.shape_cast %6 : vector<1x64x64xf32> to vector<64x64xf32>
    %cst_11 = arith.constant dense<0.000000e+00> : vector<32x64xf32>
    %8 = tpu.matmul %5, %7, %cst_11 {dimension_numbers = #tpu.dot_dimension_numbers<[1], [0], [0], [1], [0, 0, 1, 1], [], []>} : vector<32x64xf32>, vector<64x64xf32>, vector<32x64xf32> -> vector<32x64xf32>
    %c0_12 = arith.constant 0 : index
    %c0_13 = arith.constant 0 : index
    %c0_14 = arith.constant 0 : index
    %9 = vector.load %arg7[%c0_12, %c0_13, %c0_14] : memref<3x64x64xf32, #tpu.memory_space<vmem>>, vector<1x64x64xf32>
    %10 = vector.shape_cast %9 : vector<1x64x64xf32> to vector<64x64xf32>
    %cst_15 = arith.constant dense<0.000000e+00> : vector<32x64xf32>
    %11 = tpu.matmul %4, %10, %cst_15 {dimension_numbers = #tpu.dot_dimension_numbers<[1], [0], [0], [1], [0, 0, 1, 1], [], []>} : vector<32x64xf32>, vector<64x64xf32>, vector<32x64xf32> -> vector<32x64xf32>
    %12 = arith.addf %8, %11 : vector<32x64xf32>
    %c0_16 = arith.constant 0 : index
    %c0_17 = arith.constant 0 : index
    %c0_18 = arith.constant 0 : index
    %13 = vector.load %arg5[%c0_16, %c0_17, %c0_18] : memref<3x32x32xf32, #tpu.memory_space<vmem>>, vector<1x32x32xf32>
    %14 = vector.shape_cast %13 : vector<1x32x32xf32> to vector<32x32xf32>
    %cst_19 = arith.constant dense<0.000000e+00> : vector<32x64xf32>
    %15 = tpu.matmul %14, %12, %cst_19 {dimension_numbers = #tpu.dot_dimension_numbers<[1], [0], [0], [1], [0, 0, 1, 1], [], []>} : vector<32x32xf32>, vector<32x64xf32>, vector<32x64xf32> -> vector<32x64xf32>
    %c1 = arith.constant 1 : index
    %c0_20 = arith.constant 0 : index
    %c0_21 = arith.constant 0 : index
    %16 = vector.load %arg6[%c1, %c0_20, %c0_21] : memref<3x64x64xf32, #tpu.memory_space<vmem>>, vector<1x64x64xf32>
    %17 = vector.shape_cast %16 : vector<1x64x64xf32> to vector<64x64xf32>
    %cst_22 = arith.constant dense<0.000000e+00> : vector<32x64xf32>
    %18 = tpu.matmul %5, %17, %cst_22 {dimension_numbers = #tpu.dot_dimension_numbers<[1], [0], [0], [1], [0, 0, 1, 1], [], []>} : vector<32x64xf32>, vector<64x64xf32>, vector<32x64xf32> -> vector<32x64xf32>
    %c1_23 = arith.constant 1 : index
    %c0_24 = arith.constant 0 : index
    %c0_25 = arith.constant 0 : index
    %19 = vector.load %arg7[%c1_23, %c0_24, %c0_25] : memref<3x64x64xf32, #tpu.memory_space<vmem>>, vector<1x64x64xf32>
    %20 = vector.shape_cast %19 : vector<1x64x64xf32> to vector<64x64xf32>
    %cst_26 = arith.constant dense<0.000000e+00> : vector<32x64xf32>
    %21 = tpu.matmul %4, %20, %cst_26 {dimension_numbers = #tpu.dot_dimension_numbers<[1], [0], [0], [1], [0, 0, 1, 1], [], []>} : vector<32x64xf32>, vector<64x64xf32>, vector<32x64xf32> -> vector<32x64xf32>
    %22 = arith.addf %18, %21 : vector<32x64xf32>
    %23 = arith.addf %15, %22 : vector<32x64xf32>
    %c2 = arith.constant 2 : index
    %c0_27 = arith.constant 0 : index
    %c0_28 = arith.constant 0 : index
    %24 = vector.load %arg6[%c2, %c0_27, %c0_28] : memref<3x64x64xf32, #tpu.memory_space<vmem>>, vector<1x64x64xf32>
    %25 = vector.shape_cast %24 : vector<1x64x64xf32> to vector<64x64xf32>
    %cst_29 = arith.constant dense<0.000000e+00> : vector<32x64xf32>
    %26 = tpu.matmul %5, %25, %cst_29 {dimension_numbers = #tpu.dot_dimension_numbers<[1], [0], [0], [1], [0, 0, 1, 1], [], []>} : vector<32x64xf32>, vector<64x64xf32>, vector<32x64xf32> -> vector<32x64xf32>
    %c2_30 = arith.constant 2 : index
    %c0_31 = arith.constant 0 : index
    %c0_32 = arith.constant 0 : index
    %27 = vector.load %arg7[%c2_30, %c0_31, %c0_32] : memref<3x64x64xf32, #tpu.memory_space<vmem>>, vector<1x64x64xf32>
    %28 = vector.shape_cast %27 : vector<1x64x64xf32> to vector<64x64xf32>
    %cst_33 = arith.constant dense<0.000000e+00> : vector<32x64xf32>
    %29 = tpu.matmul %4, %28, %cst_33 {dimension_numbers = #tpu.dot_dimension_numbers<[1], [0], [0], [1], [0, 0, 1, 1], [], []>} : vector<32x64xf32>, vector<64x64xf32>, vector<32x64xf32> -> vector<32x64xf32>
    %30 = arith.addf %26, %29 : vector<32x64xf32>
    %c2_34 = arith.constant 2 : index
    %c0_35 = arith.constant 0 : index
    %c0_36 = arith.constant 0 : index
    %31 = vector.load %arg5[%c2_34, %c0_35, %c0_36] : memref<3x32x32xf32, #tpu.memory_space<vmem>>, vector<1x32x32xf32>
    %32 = vector.shape_cast %31 : vector<1x32x32xf32> to vector<32x32xf32>
    %cst_37 = arith.constant dense<0.000000e+00> : vector<32x64xf32>
    %33 = tpu.matmul %32, %30, %cst_37 {dimension_numbers = #tpu.dot_dimension_numbers<[1], [0], [0], [1], [0, 0, 1, 1], [], []>} : vector<32x32xf32>, vector<32x64xf32>, vector<32x64xf32> -> vector<32x64xf32>
    %34 = arith.addf %23, %33 : vector<32x64xf32>
    %cst_38 = arith.constant dense<0.000000e+00> : vector<64xf32>
    %35 = vector.multi_reduction <add>, %34, %cst_38 [0] : vector<32x64xf32> to vector<64xf32>
    %36 = vector.shape_cast %35 : vector<64xf32> to vector<1x64xf32>
    %37 = arith.mulf %34, %34 : vector<32x64xf32>
    %cst_39 = arith.constant dense<0.000000e+00> : vector<64xf32>
    %38 = vector.multi_reduction <add>, %37, %cst_39 [0] : vector<32x64xf32> to vector<64xf32>
    %39 = vector.shape_cast %38 : vector<64xf32> to vector<1x64xf32>
    %c0_40 = arith.constant 0 : index
    %c0_41 = arith.constant 0 : index
    %40 = vector.load %arg9[%c0_40, %c0_41] : memref<64x64xf32, #tpu.memory_space<vmem>>, vector<64x64xf32>
    %cst_42 = arith.constant dense<0.000000e+00> : vector<1x64xf32>
    %41 = tpu.matmul %36, %40, %cst_42 {dimension_numbers = #tpu.dot_dimension_numbers<[1], [0], [0], [1], [0, 0, 1, 1], [], []>} : vector<1x64xf32>, vector<64x64xf32>, vector<1x64xf32> -> vector<1x64xf32>
    %cst_43 = arith.constant 0.001953125 : f32
    %42 = vector.broadcast %cst_43 : f32 to vector<1x64xf32>
    %43 = arith.mulf %41, %42 : vector<1x64xf32>
    %c0_44 = arith.constant 0 : index
    %c0_45 = arith.constant 0 : index
    %44 = vector.load %arg9[%c0_44, %c0_45] : memref<64x64xf32, #tpu.memory_space<vmem>>, vector<64x64xf32>
    %cst_46 = arith.constant dense<0.000000e+00> : vector<1x64xf32>
    %45 = tpu.matmul %39, %44, %cst_46 {dimension_numbers = #tpu.dot_dimension_numbers<[1], [0], [0], [1], [0, 0, 1, 1], [], []>} : vector<1x64xf32>, vector<64x64xf32>, vector<1x64xf32> -> vector<1x64xf32>
    %cst_47 = arith.constant 0.001953125 : f32
    %46 = vector.broadcast %cst_47 : f32 to vector<1x64xf32>
    %47 = arith.mulf %45, %46 : vector<1x64xf32>
    %48 = arith.mulf %43, %43 : vector<1x64xf32>
    %49 = arith.subf %47, %48 : vector<1x64xf32>
    %cst_48 = arith.constant 9.99999974E-6 : f32
    %50 = vector.broadcast %cst_48 : f32 to vector<1x64xf32>
    %51 = arith.addf %49, %50 : vector<1x64xf32>
    %52 = math.rsqrt %51 : vector<1x64xf32>
    %c0_49 = arith.constant 0 : index
    %c0_50 = arith.constant 0 : index
    %53 = vector.load %arg10[%c0_49, %c0_50] : memref<1x64xf32, #tpu.memory_space<vmem>>, vector<1x64xf32>
    %54 = arith.mulf %52, %53 : vector<1x64xf32>
    %c0_51 = arith.constant 0 : index
    %c0_52 = arith.constant 0 : index
    %55 = vector.load %arg11[%c0_51, %c0_52] : memref<1x64xf32, #tpu.memory_space<vmem>>, vector<1x64xf32>
    %56 = arith.mulf %43, %54 : vector<1x64xf32>
    %57 = arith.subf %55, %56 : vector<1x64xf32>
    %58 = vector.broadcast %54 : vector<1x64xf32> to vector<32x64xf32>
    %59 = arith.mulf %34, %58 : vector<32x64xf32>
    %60 = vector.broadcast %57 : vector<1x64xf32> to vector<32x64xf32>
    %61 = arith.addf %59, %60 : vector<32x64xf32>
    %cst_53 = arith.constant 0.000000e+00 : f32
    %62 = vector.broadcast %cst_53 : f32 to vector<32x64xf32>
    %63 = arith.maximumf %61, %62 : vector<32x64xf32>
    %c0_54 = arith.constant 0 : index
    %c0_55 = arith.constant 0 : index
    %c0_56 = arith.constant 0 : index
    %64 = vector.load %arg8[%c0_54, %c0_55, %c0_56] : memref<3x64x128xf32, #tpu.memory_space<vmem>>, vector<1x64x128xf32>
    %65 = vector.shape_cast %64 : vector<1x64x128xf32> to vector<64x128xf32>
    %cst_57 = arith.constant dense<0.000000e+00> : vector<32x128xf32>
    %66 = tpu.matmul %63, %65, %cst_57 {dimension_numbers = #tpu.dot_dimension_numbers<[1], [0], [0], [1], [0, 0, 1, 1], [], []>} : vector<32x64xf32>, vector<64x128xf32>, vector<32x128xf32> -> vector<32x128xf32>
    %c0_58 = arith.constant 0 : index
    %c0_59 = arith.constant 0 : index
    %c0_60 = arith.constant 0 : index
    %67 = vector.load %arg5[%c0_58, %c0_59, %c0_60] : memref<3x32x32xf32, #tpu.memory_space<vmem>>, vector<1x32x32xf32>
    %68 = vector.shape_cast %67 : vector<1x32x32xf32> to vector<32x32xf32>
    %cst_61 = arith.constant dense<0.000000e+00> : vector<32x128xf32>
    %69 = tpu.matmul %68, %66, %cst_61 {dimension_numbers = #tpu.dot_dimension_numbers<[1], [0], [0], [1], [0, 0, 1, 1], [], []>} : vector<32x32xf32>, vector<32x128xf32>, vector<32x128xf32> -> vector<32x128xf32>
    %c1_62 = arith.constant 1 : index
    %c0_63 = arith.constant 0 : index
    %c0_64 = arith.constant 0 : index
    %70 = vector.load %arg8[%c1_62, %c0_63, %c0_64] : memref<3x64x128xf32, #tpu.memory_space<vmem>>, vector<1x64x128xf32>
    %71 = vector.shape_cast %70 : vector<1x64x128xf32> to vector<64x128xf32>
    %cst_65 = arith.constant dense<0.000000e+00> : vector<32x128xf32>
    %72 = tpu.matmul %63, %71, %cst_65 {dimension_numbers = #tpu.dot_dimension_numbers<[1], [0], [0], [1], [0, 0, 1, 1], [], []>} : vector<32x64xf32>, vector<64x128xf32>, vector<32x128xf32> -> vector<32x128xf32>
    %73 = arith.addf %69, %72 : vector<32x128xf32>
    %c2_66 = arith.constant 2 : index
    %c0_67 = arith.constant 0 : index
    %c0_68 = arith.constant 0 : index
    %74 = vector.load %arg8[%c2_66, %c0_67, %c0_68] : memref<3x64x128xf32, #tpu.memory_space<vmem>>, vector<1x64x128xf32>
    %75 = vector.shape_cast %74 : vector<1x64x128xf32> to vector<64x128xf32>
    %cst_69 = arith.constant dense<0.000000e+00> : vector<32x128xf32>
    %76 = tpu.matmul %63, %75, %cst_69 {dimension_numbers = #tpu.dot_dimension_numbers<[1], [0], [0], [1], [0, 0, 1, 1], [], []>} : vector<32x64xf32>, vector<64x128xf32>, vector<32x128xf32> -> vector<32x128xf32>
    %c2_70 = arith.constant 2 : index
    %c0_71 = arith.constant 0 : index
    %c0_72 = arith.constant 0 : index
    %77 = vector.load %arg5[%c2_70, %c0_71, %c0_72] : memref<3x32x32xf32, #tpu.memory_space<vmem>>, vector<1x32x32xf32>
    %78 = vector.shape_cast %77 : vector<1x32x32xf32> to vector<32x32xf32>
    %cst_73 = arith.constant dense<0.000000e+00> : vector<32x128xf32>
    %79 = tpu.matmul %78, %76, %cst_73 {dimension_numbers = #tpu.dot_dimension_numbers<[1], [0], [0], [1], [0, 0, 1, 1], [], []>} : vector<32x32xf32>, vector<32x128xf32>, vector<32x128xf32> -> vector<32x128xf32>
    %80 = arith.addf %73, %79 : vector<32x128xf32>
    %cst_74 = arith.constant dense<0.000000e+00> : vector<128xf32>
    %81 = vector.multi_reduction <add>, %80, %cst_74 [0] : vector<32x128xf32> to vector<128xf32>
    %82 = vector.shape_cast %81 : vector<128xf32> to vector<1x128xf32>
    %83 = arith.mulf %80, %80 : vector<32x128xf32>
    %cst_75 = arith.constant dense<0.000000e+00> : vector<128xf32>
    %84 = vector.multi_reduction <add>, %83, %cst_75 [0] : vector<32x128xf32> to vector<128xf32>
    %85 = vector.shape_cast %84 : vector<128xf32> to vector<1x128xf32>
    %c0_76 = arith.constant 0 : index
    %c0_77 = arith.constant 0 : index
    %86 = vector.load %arg12[%c0_76, %c0_77] : memref<128x128xf32, #tpu.memory_space<vmem>>, vector<128x128xf32>
    %cst_78 = arith.constant dense<0.000000e+00> : vector<1x128xf32>
    %87 = tpu.matmul %82, %86, %cst_78 {dimension_numbers = #tpu.dot_dimension_numbers<[1], [0], [0], [1], [0, 0, 1, 1], [], []>} : vector<1x128xf32>, vector<128x128xf32>, vector<1x128xf32> -> vector<1x128xf32>
    %cst_79 = arith.constant 0.001953125 : f32
    %88 = vector.broadcast %cst_79 : f32 to vector<1x128xf32>
    %89 = arith.mulf %87, %88 : vector<1x128xf32>
    %c0_80 = arith.constant 0 : index
    %c0_81 = arith.constant 0 : index
    %90 = vector.load %arg12[%c0_80, %c0_81] : memref<128x128xf32, #tpu.memory_space<vmem>>, vector<128x128xf32>
    %cst_82 = arith.constant dense<0.000000e+00> : vector<1x128xf32>
    %91 = tpu.matmul %85, %90, %cst_82 {dimension_numbers = #tpu.dot_dimension_numbers<[1], [0], [0], [1], [0, 0, 1, 1], [], []>} : vector<1x128xf32>, vector<128x128xf32>, vector<1x128xf32> -> vector<1x128xf32>
    %cst_83 = arith.constant 0.001953125 : f32
    %92 = vector.broadcast %cst_83 : f32 to vector<1x128xf32>
    %93 = arith.mulf %91, %92 : vector<1x128xf32>
    %94 = arith.mulf %89, %89 : vector<1x128xf32>
    %95 = arith.subf %93, %94 : vector<1x128xf32>
    %cst_84 = arith.constant 9.99999974E-6 : f32
    %96 = vector.broadcast %cst_84 : f32 to vector<1x128xf32>
    %97 = arith.addf %95, %96 : vector<1x128xf32>
    %98 = math.rsqrt %97 : vector<1x128xf32>
    %c0_85 = arith.constant 0 : index
    %c0_86 = arith.constant 0 : index
    %99 = vector.load %arg13[%c0_85, %c0_86] : memref<1x128xf32, #tpu.memory_space<vmem>>, vector<1x128xf32>
    %100 = arith.mulf %98, %99 : vector<1x128xf32>
    %c0_87 = arith.constant 0 : index
    %c0_88 = arith.constant 0 : index
    %101 = vector.load %arg14[%c0_87, %c0_88] : memref<1x128xf32, #tpu.memory_space<vmem>>, vector<1x128xf32>
    %102 = arith.mulf %89, %100 : vector<1x128xf32>
    %103 = arith.subf %101, %102 : vector<1x128xf32>
    %104 = vector.broadcast %100 : vector<1x128xf32> to vector<32x128xf32>
    %105 = arith.mulf %80, %104 : vector<32x128xf32>
    %106 = vector.broadcast %103 : vector<1x128xf32> to vector<32x128xf32>
    %107 = arith.addf %105, %106 : vector<32x128xf32>
    %cst_89 = arith.constant 0.000000e+00 : f32
    %108 = vector.broadcast %cst_89 : f32 to vector<32x128xf32>
    %109 = arith.maximumf %107, %108 : vector<32x128xf32>
    %c0_90 = arith.constant 0 : index
    %c0_91 = arith.constant 0 : index
    %110 = vector.load %arg15[%c0_90, %c0_91] : memref<32x128xf32, #tpu.memory_space<vmem>>, vector<32x128xf32>
    tpu.vector_store %arg15[%c0_90, %c0_91], %109 {strides = array<i32>} : memref<32x128xf32, #tpu.memory_space<vmem>>, vector<32x128xf32>,
    return
  }
  func.func @transform_0(%arg0: i32) -> (i32, i32) {
    %c0_i32 = arith.constant 0 : i32
    %c0_i32_0 = arith.constant 0 : i32
    %c0_i32_1 = arith.constant 0 : i32
    return %c0_i32, %c0_i32_0 : i32, i32
  }
  func.func @transform_1(%arg0: i32) -> (i32, i32) {
    %c0_i32 = arith.constant 0 : i32
    %c0_i32_0 = arith.constant 0 : i32
    %c0_i32_1 = arith.constant 0 : i32
    return %c0_i32, %c0_i32_0 : i32, i32
  }
  func.func @transform_2(%arg0: i32) -> (i32, i32) {
    %c0_i32 = arith.constant 0 : i32
    %c0_i32_0 = arith.constant 0 : i32
    %c0_i32_1 = arith.constant 0 : i32
    return %c0_i32, %c0_i32_0 : i32, i32
  }
  func.func @transform_3(%arg0: i32) -> (i32, i32) {
    %c0_i32 = arith.constant 0 : i32
    %c0_i32_0 = arith.constant 0 : i32
    %c0_i32_1 = arith.constant 0 : i32
    return %c0_i32, %c0_i32_0 : i32, i32
  }
  func.func @transform_4(%arg0: i32) -> (i32, i32, i32) {
    %c0_i32 = arith.constant 0 : i32
    %c0_i32_0 = arith.constant 0 : i32
    %c0_i32_1 = arith.constant 0 : i32
    %c0_i32_2 = arith.constant 0 : i32
    return %c0_i32, %c0_i32_0, %c0_i32_1 : i32, i32, i32
  }
  func.func @transform_5(%arg0: i32) -> (i32, i32, i32) {
    %c0_i32 = arith.constant 0 : i32
    %c0_i32_0 = arith.constant 0 : i32
    %c0_i32_1 = arith.constant 0 : i32
    %c0_i32_2 = arith.constant 0 : i32
    return %c0_i32, %c0_i32_0, %c0_i32_1 : i32, i32, i32
  }
  func.func @transform_6(%arg0: i32) -> (i32, i32, i32) {
    %c0_i32 = arith.constant 0 : i32
    %c0_i32_0 = arith.constant 0 : i32
    %c0_i32_1 = arith.constant 0 : i32
    %c0_i32_2 = arith.constant 0 : i32
    return %c0_i32, %c0_i32_0, %c0_i32_1 : i32, i32, i32
  }
  func.func @transform_7(%arg0: i32) -> (i32, i32, i32) {
    %c0_i32 = arith.constant 0 : i32
    %c0_i32_0 = arith.constant 0 : i32
    %c0_i32_1 = arith.constant 0 : i32
    %c0_i32_2 = arith.constant 0 : i32
    return %c0_i32, %c0_i32_0, %c0_i32_1 : i32, i32, i32
  }
  func.func @transform_8(%arg0: i32) -> (i32, i32) {
    %c0_i32 = arith.constant 0 : i32
    %c0_i32_0 = arith.constant 0 : i32
    %c0_i32_1 = arith.constant 0 : i32
    return %c0_i32, %c0_i32_0 : i32, i32
  }
  func.func @transform_9(%arg0: i32) -> (i32, i32) {
    %c0_i32 = arith.constant 0 : i32
    %c0_i32_0 = arith.constant 0 : i32
    %c0_i32_1 = arith.constant 0 : i32
    return %c0_i32, %c0_i32_0 : i32, i32
  }
  func.func @transform_10(%arg0: i32) -> (i32, i32) {
    %c0_i32 = arith.constant 0 : i32
    %c0_i32_0 = arith.constant 0 : i32
    %c0_i32_1 = arith.constant 0 : i32
    return %c0_i32, %c0_i32_0 : i32, i32
  }
  func.func @transform_11(%arg0: i32) -> (i32, i32) {
    %c0_i32 = arith.constant 0 : i32
    %c0_i32_0 = arith.constant 0 : i32
    %c0_i32_1 = arith.constant 0 : i32
    return %c0_i32, %c0_i32_0 : i32, i32
  }
  func.func @transform_12(%arg0: i32) -> (i32, i32) {
    %c0_i32 = arith.constant 0 : i32
    %c0_i32_0 = arith.constant 0 : i32
    %c0_i32_1 = arith.constant 0 : i32
    return %c0_i32, %c0_i32_0 : i32, i32
  }
  func.func @transform_13(%arg0: i32) -> (i32, i32) {
    %c0_i32 = arith.constant 0 : i32
    %c0_i32_0 = arith.constant 0 : i32
    %c0_i32_1 = arith.constant 0 : i32
    return %c0_i32, %c0_i32_0 : i32, i32
  }
  func.func @transform_14(%arg0: i32) -> (i32, i32) {
    %c0_i32 = arith.constant 0 : i32
    %c0_i32_0 = arith.constant 0 : i32
    %c0_i32_1 = arith.constant 0 : i32
    return %c0_i32, %c0_i32_0 : i32, i32
  }
}

</mosaic_0001>

<llo_original>
// kernel: tile.24
$region0: #{tile.24}
  %s0 = inlined_call_operand.vmem [shape: f32[16,4], index: 0, kind: input, shape index: {}]
  %s1 = inlined_call_operand.vmem [shape: f32[1,64], index: 1, kind: output, shape index: {}]
  $region1: #{tile.24} parent=0
    #allocation0 [shape = 'u8[4096]{0}', space=vmem, size = 0x1000, scoped, tag = 'scoped mem for output reshape']
    %v2 = vld [vmem:[%s0] sm:$0x1]
    %vm3 = vcmask 31744
    %4 = vst.msk [vmem:[#allocation0] sm:$0x1] %vm3, %v2
    %s5 = scalar_lea.vmem %s0, 15
    %v6 = vld [vmem:[%s5] sm:$0x1]
    %7 = vrot.lane.b32.xlu0 %v6, 60
    %v8 = vpop.permute.xlu0 %7
    %vm9 = vcmask 523744
    %10 = vst.msk [vmem:[#allocation0] sm:$0x1] %vm9, %v8
    %s11 = scalar_lea.vmem %s0, 14
    %v12 = vld [vmem:[%s11] sm:$0x1]
    %13 = vrot.lane.b32.xlu0 %v12, 56
    %v14 = vpop.permute.xlu0 %13
    %vm15 = vcmask 490944
    %16 = vst.msk [vmem:[#allocation0] sm:$0x1] %vm15, %v14
    %s17 = scalar_lea.vmem %s0, 13
    %v18 = vld [vmem:[%s17] sm:$0x1]
    %19 = vrot.lane.b32.xlu0 %v18, 52
    %v20 = vpop.permute.xlu0 %19
    %vm21 = vcmask 458144
    %22 = vst.msk [vmem:[#allocation0] sm:$0x1] %vm21, %v20
    %s23 = scalar_lea.vmem %s0, 12
    %v24 = vld [vmem:[%s23] sm:$0x1]
    %25 = vrot.lane.b32.xlu0 %v24, 48
    %v26 = vpop.permute.xlu0 %25
    %vm27 = vcmask 425344
    %28 = vst.msk [vmem:[#allocation0] sm:$0x1] %vm27, %v26
    %s29 = scalar_lea.vmem %s0, 11
    %v30 = vld [vmem:[%s29] sm:$0x1]
    %31 = vrot.lane.b32.xlu0 %v30, 44
    %v32 = vpop.permute.xlu0 %31
    %vm33 = vcmask 392544
    %34 = vst.msk [vmem:[#allocation0] sm:$0x1] %vm33, %v32
    %s35 = scalar_lea.vmem %s0, 10
    %v36 = vld [vmem:[%s35] sm:$0x1]
    %37 = vrot.lane.b32.xlu0 %v36, 40
    %v38 = vpop.permute.xlu0 %37
    %vm39 = vcmask 359744
    %40 = vst.msk [vmem:[#allocation0] sm:$0x1] %vm39, %v38
    %s41 = scalar_lea.vmem %s0, 9
    %v42 = vld [vmem:[%s41] sm:$0x1]
    %43 = vrot.lane.b32.xlu0 %v42, 36
    %v44 = vpop.permute.xlu0 %43
    %vm45 = vcmask 326944
    %46 = vst.msk [vmem:[#allocation0] sm:$0x1] %vm45, %v44
    %s47 = scalar_lea.vmem %s0, 8
    %v48 = vld [vmem:[%s47] sm:$0x1]
    %49 = vrot.lane.b32.xlu0 %v48, 32
    %v50 = vpop.permute.xlu0 %49
    %vm51 = vcmask 294144
    %52 = vst.msk [vmem:[#allocation0] sm:$0x1] %vm51, %v50
    %s53 = scalar_lea.vmem %s0, 7
    %v54 = vld [vmem:[%s53] sm:$0x1]
    %55 = vrot.lane.b32.xlu0 %v54, 28
    %v56 = vpop.permute.xlu0 %55
    %vm57 = vcmask 261344
    %58 = vst.msk [vmem:[#allocation0] sm:$0x1] %vm57, %v56
    %s59 = scalar_lea.vmem %s0, 6
    %v60 = vld [vmem:[%s59] sm:$0x1]
    %61 = vrot.lane.b32.xlu0 %v60, 24
    %v62 = vpop.permute.xlu0 %61
    %vm63 = vcmask 228544
    %64 = vst.msk [vmem:[#allocation0] sm:$0x1] %vm63, %v62
    %s65 = scalar_lea.vmem %s0, 5
    %v66 = vld [vmem:[%s65] sm:$0x1]
    %67 = vrot.lane.b32.xlu0 %v66, 20
    %v68 = vpop.permute.xlu0 %67
    %vm69 = vcmask 195744
    %70 = vst.msk [vmem:[#allocation0] sm:$0x1] %vm69, %v68
    %s71 = scalar_lea.vmem %s0, 4
    %v72 = vld [vmem:[%s71] sm:$0x1]
    %73 = vrot.lane.b32.xlu0 %v72, 16
    %v74 = vpop.permute.xlu0 %73
    %vm75 = vcmask 162944
    %76 = vst.msk [vmem:[#allocation0] sm:$0x1] %vm75, %v74
    %s77 = scalar_lea.vmem %s0, 3
    %v78 = vld [vmem:[%s77] sm:$0x1]
    %79 = vrot.lane.b32.xlu0 %v78, 12
    %v80 = vpop.permute.xlu0 %79
    %vm81 = vcmask 130144
    %82 = vst.msk [vmem:[#allocation0] sm:$0x1] %vm81, %v80
    %s83 = scalar_lea.vmem %s0, 2
    %v84 = vld [vmem:[%s83] sm:$0x1]
    %85 = vrot.lane.b32.xlu0 %v84, 8
    %v86 = vpop.permute.xlu0 %85
    %vm87 = vcmask 97344
    %88 = vst.msk [vmem:[#allocation0] sm:$0x1] %vm87, %v86
    %s89 = scalar_lea.vmem %s0, 1
    %v90 = vld [vmem:[%s89] sm:$0x1]
    %91 = vrot.lane.b32.xlu0 %v90, 4
    %v92 = vpop.permute.xlu0 %91
    %vm93 = vcmask 64544
    %94 = vst.msk [vmem:[#allocation0] sm:$0x1] %vm93, %v92
    %s96 = sshllo.u32 0, 1
    %v98 = vld [vmem:[#allocation0] sm:%s96]
    %s99 = sshllo.u32 0, 1
    %100 = vst [vmem:[%s1] sm:%s99] %v98

// kernel: tile.23
$region0: #{tile.23}
  #allocation0 [shape = 's32[1]{0}', space=sflag, size = 0x4, scoped, tag = 'scoped memory for tile.23']
  %s0 = inlined_call_operand.vmem [shape: f32[4], index: 0, kind: input, shape index: {}]
  %s1 = inlined_call_operand.vmem [shape: f32[16,4], index: 1, kind: output, shape index: {}]
  // Predicated region
  $region2: #{tile.23} parent=0 // pred_check
    _
  $region3: #{tile.23} parent=0 // pred_check_branch
    %3 = sbr.rel (0) target = $region5
  $region4: #{tile.23} parent=0 // pred_region
    _
  $region5: #{tile.23} parent=0 // pred_fallthru
    _
  %v4 = vld [vmem:[%s0] ss:$0 sm:$0xff]
  %5 = vst [vmem:[%s1] sm:$0xff] %v4
  %s6 = scalar_lea.vmem %s1, 8
  %7 = vst [vmem:[%s6] sm:$0xff] %v4

// kernel: tile.33
$region0: #{tile.33}
  #allocation0 [shape = 's32[1]{0}', space=sflag, size = 0x4, scoped, tag = 'scoped memory for tile.33']
  %s0 = inlined_call_operand.vmem [shape: f32[8], index: 0, kind: input, shape index: {}]
  %s1 = inlined_call_operand.vmem [shape: f32[16,8], index: 1, kind: output, shape index: {}]
  // Predicated region
  $region2: #{tile.33} parent=0 // pred_check
    _
  $region3: #{tile.33} parent=0 // pred_check_branch
    %3 = sbr.rel (0) target = $region5
  $region4: #{tile.33} parent=0 // pred_region
    _
  $region5: #{tile.33} parent=0 // pred_fallthru
    _
  %v4 = vld [vmem:[%s0] ss:$0 sm:$0xff]
  %5 = vst [vmem:[%s1] sm:$0xff] %v4
  %s6 = scalar_lea.vmem %s1, 8
  %7 = vst [vmem:[%s6] sm:$0xff] %v4

// kernel: tile.34
$region0: #{tile.34}
  %s0 = inlined_call_operand.vmem [shape: f32[16,8], index: 0, kind: input, shape index: {}]
  %s1 = inlined_call_operand.vmem [shape: f32[1,128], index: 1, kind: output, shape index: {}]
  $region1: #{tile.34} parent=0
    #allocation0 [shape = 'u8[4096]{0}', space=vmem, size = 0x1000, scoped, tag = 'scoped mem for output reshape']
    %v2 = vld [vmem:[%s0] sm:$0x1]
    %vm3 = vcmask 64512
    %4 = vst.msk [vmem:[#allocation0] sm:$0x1] %vm3, %v2
    %s5 = scalar_lea.vmem %s0, 15
    %v6 = vld [vmem:[%s5] sm:$0x1]
    %7 = vrot.lane.b32.xlu0 %v6, 120
    %v8 = vpop.permute.xlu0 %7
    %vm9 = vcmask 1048512
    %10 = vst.msk [vmem:[#allocation0] sm:$0x1] %vm9, %v8
    %s11 = scalar_lea.vmem %s0, 14
    %v12 = vld [vmem:[%s11] sm:$0x1]
    %13 = vrot.lane.b32.xlu0 %v12, 112
    %v14 = vpop.permute.xlu0 %13
    %vm15 = vcmask 982912
    %16 = vst.msk [vmem:[#allocation0] sm:$0x1] %vm15, %v14
    %s17 = scalar_lea.vmem %s0, 13
    %v18 = vld [vmem:[%s17] sm:$0x1]
    %19 = vrot.lane.b32.xlu0 %v18, 104
    %v20 = vpop.permute.xlu0 %19
    %vm21 = vcmask 917312
    %22 = vst.msk [vmem:[#allocation0] sm:$0x1] %vm21, %v20
    %s23 = scalar_lea.vmem %s0, 12
    %v24 = vld [vmem:[%s23] sm:$0x1]
    %25 = vrot.lane.b32.xlu0 %v24, 96
    %v26 = vpop.permute.xlu0 %25
    %vm27 = vcmask 851712
    %28 = vst.msk [vmem:[#allocation0] sm:$0x1] %vm27, %v26
    %s29 = scalar_lea.vmem %s0, 11
    %v30 = vld [vmem:[%s29] sm:$0x1]
    %31 = vrot.lane.b32.xlu0 %v30, 88
    %v32 = vpop.permute.xlu0 %31
    %vm33 = vcmask 786112
    %34 = vst.msk [vmem:[#allocation0] sm:$0x1] %vm33, %v32
    %s35 = scalar_lea.vmem %s0, 10
    %v36 = vld [vmem:[%s35] sm:$0x1]
    %37 = vrot.lane.b32.xlu0 %v36, 80
    %v38 = vpop.permute.xlu0 %37
    %vm39 = vcmask 720512
    %40 = vst.msk [vmem:[#allocation0] sm:$0x1] %vm39, %v38
    %s41 = scalar_lea.vmem %s0, 9
    %v42 = vld [vmem:[%s41] sm:$0x1]
    %43 = vrot.lane.b32.xlu0 %v42, 72
    %v44 = vpop.permute.xlu0 %43
    %vm45 = vcmask 654912
    %46 = vst.msk [vmem:[#allocation0] sm:$0x1] %vm45, %v44
    %s47 = scalar_lea.vmem %s0, 8
    %v48 = vld [vmem:[%s47] sm:$0x1]
    %49 = vrot.lane.b32.xlu0 %v48, 64
    %v50 = vpop.permute.xlu0 %49
    %vm51 = vcmask 589312
    %52 = vst.msk [vmem:[#allocation0] sm:$0x1] %vm51, %v50
    %s53 = scalar_lea.vmem %s0, 7
    %v54 = vld [vmem:[%s53] sm:$0x1]
    %55 = vrot.lane.b32.xlu0 %v54, 56
    %v56 = vpop.permute.xlu0 %55
    %vm57 = vcmask 523712
    %58 = vst.msk [vmem:[#allocation0] sm:$0x1] %vm57, %v56
    %s59 = scalar_lea.vmem %s0, 6
    %v60 = vld [vmem:[%s59] sm:$0x1]
    %61 = vrot.lane.b32.xlu0 %v60, 48
    %v62 = vpop.permute.xlu0 %61
    %vm63 = vcmask 458112
    %64 = vst.msk [vmem:[#allocation0] sm:$0x1] %vm63, %v62
    %s65 = scalar_lea.vmem %s0, 5
    %v66 = vld [vmem:[%s65] sm:$0x1]
    %67 = vrot.lane.b32.xlu0 %v66, 40
    %v68 = vpop.permute.xlu0 %67
    %vm69 = vcmask 392512
    %70 = vst.msk [vmem:[#allocation0] sm:$0x1] %vm69, %v68
    %s71 = scalar_lea.vmem %s0, 4
    %v72 = vld [vmem:[%s71] sm:$0x1]
    %73 = vrot.lane.b32.xlu0 %v72, 32
    %v74 = vpop.permute.xlu0 %73
    %vm75 = vcmask 326912
    %76 = vst.msk [vmem:[#allocation0] sm:$0x1] %vm75, %v74
    %s77 = scalar_lea.vmem %s0, 3
    %v78 = vld [vmem:[%s77] sm:$0x1]
    %79 = vrot.lane.b32.xlu0 %v78, 24
    %v80 = vpop.permute.xlu0 %79
    %vm81 = vcmask 261312
    %82 = vst.msk [vmem:[#allocation0] sm:$0x1] %vm81, %v80
    %s83 = scalar_lea.vmem %s0, 2
    %v84 = vld [vmem:[%s83] sm:$0x1]
    %85 = vrot.lane.b32.xlu0 %v84, 16
    %v86 = vpop.permute.xlu0 %85
    %vm87 = vcmask 195712
    %88 = vst.msk [vmem:[#allocation0] sm:$0x1] %vm87, %v86
    %s89 = scalar_lea.vmem %s0, 1
    %v90 = vld [vmem:[%s89] sm:$0x1]
    %91 = vrot.lane.b32.xlu0 %v90, 8
    %v92 = vpop.permute.xlu0 %91
    %vm93 = vcmask 130112
    %94 = vst.msk [vmem:[#allocation0] sm:$0x1] %vm93, %v92
    %s96 = sshllo.u32 0, 1
    %v98 = vld [vmem:[#allocation0] sm:%s96]
    %s99 = sshllo.u32 0, 1
    %100 = vst [vmem:[%s1] sm:%s99] %v98

// kernel: up_forward.1
$region0: #{up_forward.1}
  #allocation0 [shape = 'u32[]', space=smem, size = 0x4, offset = 0x4, fixed_abs, tag = 'smem constant byte address 0x4 - core index']
  #allocation1 [shape = 'u32[144,128]{1,0:T(1,128)}', space=vmem, size = 0x12000, scoped, tag = 'internal scratch']
  %s0 = inlined_call_operand.vmem [shape: f32[16,32], index: 0, kind: input, shape index: {}]
  %s1 = inlined_call_operand.vmem [shape: f32[32,64], index: 1, kind: input, shape index: {}]
  %s2 = inlined_call_operand.vmem [shape: f32[32,16], index: 2, kind: input, shape index: {}]
  %s3 = inlined_call_operand.vmem [shape: f32[32,64], index: 3, kind: input, shape index: {}]
  %s4 = inlined_call_operand.vmem [shape: f32[3,32,32], index: 4, kind: input, shape index: {}]
  %s5 = inlined_call_operand.vmem [shape: f32[3,64,64], index: 5, kind: input, shape index: {}]
  %s6 = inlined_call_operand.vmem [shape: f32[3,64,64], index: 6, kind: input, shape index: {}]
  %s7 = inlined_call_operand.vmem [shape: f32[3,64,128], index: 7, kind: input, shape index: {}]
  %s8 = inlined_call_operand.vmem [shape: f32[64,64], index: 8, kind: input, shape index: {}]
  %s9 = inlined_call_operand.vmem [shape: f32[1,64], index: 9, kind: input, shape index: {}]
  %s10 = inlined_call_operand.vmem [shape: f32[1,64], index: 10, kind: input, shape index: {}]
  %s11 = inlined_call_operand.vmem [shape: f32[128,128], index: 11, kind: input, shape index: {}]
  %s12 = inlined_call_operand.vmem [shape: f32[1,128], index: 12, kind: input, shape index: {}]
  %s13 = inlined_call_operand.vmem [shape: f32[1,128], index: 13, kind: input, shape index: {}]
  %s14 = inlined_call_operand.vmem [shape: f32[32,128], index: 14, kind: output, shape index: {}]
  %s15 = sld [smem:[#allocation0]]
  $region66: #{up_forward.1} parent=0
    _
  %s17 = ssub.s32 1, %s15
  %s18 = scalar_select 0, %s17, %s15
  // Predicated region
  $region2: #{up_forward.1} parent=0 // pred_check
    _
  $region3: #{up_forward.1} parent=0 // pred_check_branch
    %20 = sbr.rel (0) target = $region5
  $region4: #{up_forward.1} parent=0 // pred_region
    _
  $region5: #{up_forward.1} parent=0 // pred_fallthru
    _
  // Predicated region
  $region6: #{up_forward.1} parent=0 // pred_check
    _
  $region7: #{up_forward.1} parent=0 // pred_check_branch
    %22 = sbr.rel (0) target = $region9
  $region8: #{up_forward.1} parent=0 // pred_region
    _
  $region9: #{up_forward.1} parent=0 // pred_fallthru
    _
  // Predicated region
  $region10: #{up_forward.1} parent=0 // pred_check
    _
  $region11: #{up_forward.1} parent=0 // pred_check_branch
    %24 = sbr.rel (0) target = $region13
  $region12: #{up_forward.1} parent=0 // pred_region
    _
  $region13: #{up_forward.1} parent=0 // pred_fallthru
    _
  // Predicated region
  $region14: #{up_forward.1} parent=0 // pred_check
    _
  $region15: #{up_forward.1} parent=0 // pred_check_branch
    %26 = sbr.rel (0) target = $region17
  $region16: #{up_forward.1} parent=0 // pred_region
    _
  $region17: #{up_forward.1} parent=0 // pred_fallthru
    _
  // Predicated region
  $region18: #{up_forward.1} parent=0 // pred_check
    _
  $region19: #{up_forward.1} parent=0 // pred_check_branch
    %28 = sbr.rel (0) target = $region21
  $region20: #{up_forward.1} parent=0 // pred_region
    _
  $region21: #{up_forward.1} parent=0 // pred_fallthru
    _
  // Predicated region
  $region22: #{up_forward.1} parent=0 // pred_check
    _
  $region23: #{up_forward.1} parent=0 // pred_check_branch
    %30 = sbr.rel (0) target = $region25
  $region24: #{up_forward.1} parent=0 // pred_region
    _
  $region25: #{up_forward.1} parent=0 // pred_fallthru
    _
  // Predicated region
  $region26: #{up_forward.1} parent=0 // pred_check
    _
  $region27: #{up_forward.1} parent=0 // pred_check_branch
    %32 = sbr.rel (0) target = $region29
  $region28: #{up_forward.1} parent=0 // pred_region
    _
  $region29: #{up_forward.1} parent=0 // pred_fallthru
    _
  // Predicated region
  $region30: #{up_forward.1} parent=0 // pred_check
    _
  $region31: #{up_forward.1} parent=0 // pred_check_branch
    %34 = sbr.rel (0) target = $region33
  $region32: #{up_forward.1} parent=0 // pred_region
    _
  $region33: #{up_forward.1} parent=0 // pred_fallthru
    _
  // Predicated region
  $region34: #{up_forward.1} parent=0 // pred_check
    _
  $region35: #{up_forward.1} parent=0 // pred_check_branch
    %36 = sbr.rel (0) target = $region37
  $region36: #{up_forward.1} parent=0 // pred_region
    _
  $region37: #{up_forward.1} parent=0 // pred_fallthru
    _
  // Predicated region
  $region38: #{up_forward.1} parent=0 // pred_check
    _
  $region39: #{up_forward.1} parent=0 // pred_check_branch
    %38 = sbr.rel (0) target = $region41
  $region40: #{up_forward.1} parent=0 // pred_region
    _
  $region41: #{up_forward.1} parent=0 // pred_fallthru
    _
  // Predicated region
  $region42: #{up_forward.1} parent=0 // pred_check
    _
  $region43: #{up_forward.1} parent=0 // pred_check_branch
    %40 = sbr.rel (0) target = $region45
  $region44: #{up_forward.1} parent=0 // pred_region
    _
  $region45: #{up_forward.1} parent=0 // pred_fallthru
    _
  // Predicated region
  $region46: #{up_forward.1} parent=0 // pred_check
    _
  $region47: #{up_forward.1} parent=0 // pred_check_branch
    %42 = sbr.rel (0) target = $region49
  $region48: #{up_forward.1} parent=0 // pred_region
    _
  $region49: #{up_forward.1} parent=0 // pred_fallthru
    _
  // Predicated region
  $region50: #{up_forward.1} parent=0 // pred_check
    _
  $region51: #{up_forward.1} parent=0 // pred_check_branch
    %44 = sbr.rel (0) target = $region53
  $region52: #{up_forward.1} parent=0 // pred_region
    _
  $region53: #{up_forward.1} parent=0 // pred_fallthru
    _
  // Predicated region
  $region54: #{up_forward.1} parent=0 // pred_check
    _
  $region55: #{up_forward.1} parent=0 // pred_check_branch
    %46 = sbr.rel (0) target = $region57
  $region56: #{up_forward.1} parent=0 // pred_region
    _
  $region57: #{up_forward.1} parent=0 // pred_fallthru
    _
  %v47 = vld [vmem:[%s2] sm:$0xff]
  %v48 = vld [vmem:[%s2 + $0x8] sm:$0xff]
  %v49 = vld [vmem:[%s2 + $0x10] sm:$0xff]
  %v50 = vld [vmem:[%s2 + $0x18] sm:$0xff]
  %v51 = vld [vmem:[%s0] sm:$0xff]
  %v52 = vld [vmem:[%s0 + $0x8] sm:$0xff]
  %vm53 = vcmask 130048
  %v55 = vsel %vm53, %v47, 0
  %v58 = vsel %vm53, %v48, 0
  %v61 = vsel %vm53, %v49, 0
  %v64 = vsel %vm53, %v50, 0
  %66 = vmatprep.subr.mxu0 0.0
  %67 = vmatpush1.msra.mxu0 %v51
  %68 = vmatprep.subr.mxu0 0.0
  %69 = vmatpush1.msra.mxu0 %v52
  %70 = vmatprep.subr.mxu0 0.0
  %71 = vmatpush1.msra.mxu0 0.0
  %72 = vmatprep.subr.mxu0 0.0
  %73 = vmatpush1.msra.mxu0 0.0
  %74 = vmatprep.subr.mxu0 0.0
  %75 = vmatpush1.msra.mxu0 0.0
  %76 = vmatprep.subr.mxu0 0.0
  %77 = vmatpush1.msra.mxu0 0.0
  %78 = vmatprep.subr.mxu0 0.0
  %79 = vmatpush1.msra.mxu0 0.0
  %80 = vmatprep.subr.mxu0 0.0
  %81 = vmatpush1.msra.mxu0 0.0
  %82 = vmatprep.subr.mxu0 0.0
  %83 = vmatpush1.msra.mxu0 0.0
  %84 = vmatprep.subr.mxu0 0.0
  %85 = vmatpush1.msra.mxu0 0.0
  %86 = vmatprep.subr.mxu0 0.0
  %87 = vmatpush1.msra.mxu0 0.0
  %88 = vmatprep.subr.mxu0 0.0
  %89 = vmatpush1.msra.mxu0 0.0
  %90 = vmatprep.subr.mxu0 0.0
  %91 = vmatpush1.msra.mxu0 0.0
  %92 = vmatprep.subr.mxu0 0.0
  %93 = vmatpush1.msra.mxu0 0.0
  %94 = vmatprep.subr.mxu0 0.0
  %95 = vmatpush1.msra.mxu0 0.0
  %96 = vmatprep.subr.mxu0 0.0
  %97 = vmatpush1.msra.mxu0 0.0
  %98 = vmatprep.subr.mxu0 0.0
  %99 = vmatpush1.msra.mxu0 0.0
  %100 = vmatprep.subr.mxu0 0.0
  %101 = vmatpush1.msra.mxu0 0.0
  %102 = vmatprep.subr.mxu0 0.0
  %103 = vmatpush1.msra.mxu0 0.0
  %104 = vmatprep.subr.mxu0 0.0
  %105 = vmatpush1.msra.mxu0 0.0
  %106 = vmatprep.subr.mxu0 0.0
  %107 = vmatpush1.msra.mxu0 0.0
  %108 = vmatprep.subr.mxu0 0.0
  %109 = vmatpush1.msra.mxu0 0.0
  %110 = vmatprep.subr.mxu0 0.0
  %111 = vmatpush1.msra.mxu0 0.0
  %112 = vmatprep.subr.mxu0 0.0
  %113 = vmatpush1.msra.mxu0 0.0
  %114 = vmatprep.subr.mxu0 0.0
  %115 = vmatpush1.msra.mxu0 0.0
  %116 = vmatprep.subr.mxu0 0.0
  %117 = vmatpush1.msra.mxu0 0.0
  %118 = vmatprep.subr.mxu0 0.0
  %119 = vmatpush1.msra.mxu0 0.0
  %120 = vmatprep.subr.mxu0 0.0
  %121 = vmatpush1.msra.mxu0 0.0
  %122 = vmatprep.subr.mxu0 0.0
  %123 = vmatpush1.msra.mxu0 0.0
  %124 = vmatprep.subr.mxu0 0.0
  %125 = vmatpush1.msra.mxu0 0.0
  %126 = vmatprep.subr.mxu0 0.0
  %127 = vmatpush1.msra.mxu0 0.0
  %128 = vmatprep.subr.mxu0 0.0
  %129 = vmatpush1.msra.mxu0 0.0
  %130 = vmatprep.mubr.f32.mxu0 0.0
  %131 = vmatmul.mubr.f32.gmra.mrb[0].mxu0 %v55
  %v132 = vpop.f32.mrb[0].mxu0
  %v133 = vadd.f32 0.0, %v132
  %v134 = vpop.f32.mrb[0].mxu0
  %135 = vmatprep.mubr.f32.mxu0 0.0
  %136 = vmatmul.mubr.f32.gmra.mrb[0].mxu0 %v58
  %v137 = vpop.f32.mrb[0].mxu0
  %v138 = vadd.f32 0.0, %v137
  %v139 = vpop.f32.mrb[0].mxu0
  %140 = vmatprep.mubr.f32.mxu0 0.0
  %141 = vmatmul.mubr.f32.gmra.mrb[0].mxu0 %v61
  %v142 = vpop.f32.mrb[0].mxu0
  %v143 = vadd.f32 0.0, %v142
  %v144 = vpop.f32.mrb[0].mxu0
  %145 = vmatprep.mubr.f32.mxu0 0.0
  %146 = vmatmul.mubr.f32.gmra.mrb[0].mxu0 %v64
  %v147 = vpop.f32.mrb[0].mxu0
  %v148 = vadd.f32 0.0, %v147
  %v149 = vpop.f32.mrb[0].mxu0
  %150 = vdwg.mxu0
  %v151 = vld [vmem:[%s3] sm:$0xff]
  %v152 = vld [vmem:[%s3 + $0x8] sm:$0xff]
  %v153 = vld [vmem:[%s3 + $0x10] sm:$0xff]
  %v154 = vld [vmem:[%s3 + $0x18] sm:$0xff]
  %vm155 = vcmask 261120
  %v157 = vsel %vm155, %v133, 0
  %v160 = vsel %vm155, %v138, 0
  %v163 = vsel %vm155, %v143, 0
  %v166 = vsel %vm155, %v148, 0
  %168 = vmatprep.subr.mxu0 0.0
  %169 = vmatpush1.msra.mxu0 %v151
  %170 = vmatprep.subr.mxu0 0.0
  %171 = vmatpush1.msra.mxu0 %v152
  %172 = vmatprep.subr.mxu0 0.0
  %173 = vmatpush1.msra.mxu0 %v153
  %174 = vmatprep.subr.mxu0 0.0
  %175 = vmatpush1.msra.mxu0 %v154
  %176 = vmatprep.subr.mxu0 0.0
  %177 = vmatpush1.msra.mxu0 0.0
  %178 = vmatprep.subr.mxu0 0.0
  %179 = vmatpush1.msra.mxu0 0.0
  %180 = vmatprep.subr.mxu0 0.0
  %181 = vmatpush1.msra.mxu0 0.0
  %182 = vmatprep.subr.mxu0 0.0
  %183 = vmatpush1.msra.mxu0 0.0
  %184 = vmatprep.subr.mxu0 0.0
  %185 = vmatpush1.msra.mxu0 0.0
  %186 = vmatprep.subr.mxu0 0.0
  %187 = vmatpush1.msra.mxu0 0.0
  %188 = vmatprep.subr.mxu0 0.0
  %189 = vmatpush1.msra.mxu0 0.0
  %190 = vmatprep.subr.mxu0 0.0
  %191 = vmatpush1.msra.mxu0 0.0
  %192 = vmatprep.subr.mxu0 0.0
  %193 = vmatpush1.msra.mxu0 0.0
  %194 = vmatprep.subr.mxu0 0.0
  %195 = vmatpush1.msra.mxu0 0.0
  %196 = vmatprep.subr.mxu0 0.0
  %197 = vmatpush1.msra.mxu0 0.0
  %198 = vmatprep.subr.mxu0 0.0
  %199 = vmatpush1.msra.mxu0 0.0
  %200 = vmatprep.subr.mxu0 0.0
  %201 = vmatpush1.msra.mxu0 0.0
  %202 = vmatprep.subr.mxu0 0.0
  %203 = vmatpush1.msra.mxu0 0.0
  %204 = vmatprep.subr.mxu0 0.0
  %205 = vmatpush1.msra.mxu0 0.0
  %206 = vmatprep.subr.mxu0 0.0
  %207 = vmatpush1.msra.mxu0 0.0
  %208 = vmatprep.subr.mxu0 0.0
  %209 = vmatpush1.msra.mxu0 0.0
  %210 = vmatprep.subr.mxu0 0.0
  %211 = vmatpush1.msra.mxu0 0.0
  %212 = vmatprep.subr.mxu0 0.0
  %213 = vmatpush1.msra.mxu0 0.0
  %214 = vmatprep.subr.mxu0 0.0
  %215 = vmatpush1.msra.mxu0 0.0
  %216 = vmatprep.subr.mxu0 0.0
  %217 = vmatpush1.msra.mxu0 0.0
  %218 = vmatprep.subr.mxu0 0.0
  %219 = vmatpush1.msra.mxu0 0.0
  %220 = vmatprep.subr.mxu0 0.0
  %221 = vmatpush1.msra.mxu0 0.0
  %222 = vmatprep.subr.mxu0 0.0
  %223 = vmatpush1.msra.mxu0 0.0
  %224 = vmatprep.subr.mxu0 0.0
  %225 = vmatpush1.msra.mxu0 0.0
  %226 = vmatprep.subr.mxu0 0.0
  %227 = vmatpush1.msra.mxu0 0.0
  %228 = vmatprep.subr.mxu0 0.0
  %229 = vmatpush1.msra.mxu0 0.0
  %230 = vmatprep.subr.mxu0 0.0
  %231 = vmatpush1.msra.mxu0 0.0
  %232 = vmatprep.mubr.f32.mxu0 0.0
  %233 = vmatmul.mubr.f32.gmra.mrb[0].mxu0 %v157
  %v234 = vpop.f32.mrb[0].mxu0
  %v235 = vadd.f32 0.0, %v234
  %v236 = vpop.f32.mrb[0].mxu0
  %237 = vmatprep.mubr.f32.mxu0 0.0
  %238 = vmatmul.mubr.f32.gmra.mrb[0].mxu0 %v160
  %v239 = vpop.f32.mrb[0].mxu0
  %v240 = vadd.f32 0.0, %v239
  %v241 = vpop.f32.mrb[0].mxu0
  %242 = vmatprep.mubr.f32.mxu0 0.0
  %243 = vmatmul.mubr.f32.gmra.mrb[0].mxu0 %v163
  %v244 = vpop.f32.mrb[0].mxu0
  %v245 = vadd.f32 0.0, %v244
  %v246 = vpop.f32.mrb[0].mxu0
  %247 = vmatprep.mubr.f32.mxu0 0.0
  %248 = vmatmul.mubr.f32.gmra.mrb[0].mxu0 %v166
  %v249 = vpop.f32.mrb[0].mxu0
  %v250 = vadd.f32 0.0, %v249
  %v251 = vpop.f32.mrb[0].mxu0
  %252 = vdwg.mxu0
  %v253 = vld [vmem:[%s1] sm:$0xff]
  %v254 = vld [vmem:[%s1 + $0x8] sm:$0xff]
  %v255 = vld [vmem:[%s1 + $0x10] sm:$0xff]
  %v256 = vld [vmem:[%s1 + $0x18] sm:$0xff]
  %v257 = vld [vmem:[%s5] sm:$0xff]
  %v258 = vld [vmem:[%s5 + $0x8] sm:$0xff]
  %v259 = vld [vmem:[%s5 + $0x10] sm:$0xff]
  %v260 = vld [vmem:[%s5 + $0x18] sm:$0xff]
  %v261 = vld [vmem:[%s5 + $0x20] sm:$0xff]
  %v262 = vld [vmem:[%s5 + $0x28] sm:$0xff]
  %v263 = vld [vmem:[%s5 + $0x30] sm:$0xff]
  %v264 = vld [vmem:[%s5 + $0x38] sm:$0xff]
  %v265 = vld [vmem:[%s6] sm:$0xff]
  %v266 = vld [vmem:[%s6 + $0x8] sm:$0xff]
  %v267 = vld [vmem:[%s6 + $0x10] sm:$0xff]
  %v268 = vld [vmem:[%s6 + $0x18] sm:$0xff]
  %v269 = vld [vmem:[%s6 + $0x20] sm:$0xff]
  %v270 = vld [vmem:[%s6 + $0x28] sm:$0xff]
  %v271 = vld [vmem:[%s6 + $0x30] sm:$0xff]
  %v272 = vld [vmem:[%s6 + $0x38] sm:$0xff]
  %vm273 = vcmask 523264
  %v275 = vsel %vm273, %v235, 0
  %v278 = vsel %vm273, %v240, 0
  %v281 = vsel %vm273, %v245, 0
  %v284 = vsel %vm273, %v250, 0
  %286 = vmatprep.subr.mxu0 0.0
  %287 = vmatpush1.msra.mxu0 %v265
  %288 = vmatprep.subr.mxu0 0.0
  %289 = vmatpush1.msra.mxu0 %v266
  %290 = vmatprep.subr.mxu0 0.0
  %291 = vmatpush1.msra.mxu0 %v267
  %292 = vmatprep.subr.mxu0 0.0
  %293 = vmatpush1.msra.mxu0 %v268
  %294 = vmatprep.subr.mxu0 0.0
  %295 = vmatpush1.msra.mxu0 %v269
  %296 = vmatprep.subr.mxu0 0.0
  %297 = vmatpush1.msra.mxu0 %v270
  %298 = vmatprep.subr.mxu0 0.0
  %299 = vmatpush1.msra.mxu0 %v271
  %300 = vmatprep.subr.mxu0 0.0
  %301 = vmatpush1.msra.mxu0 %v272
  %302 = vmatprep.subr.mxu0 0.0
  %303 = vmatpush1.msra.mxu0 0.0
  %304 = vmatprep.subr.mxu0 0.0
  %305 = vmatpush1.msra.mxu0 0.0
  %306 = vmatprep.subr.mxu0 0.0
  %307 = vmatpush1.msra.mxu0 0.0
  %308 = vmatprep.subr.mxu0 0.0
  %309 = vmatpush1.msra.mxu0 0.0
  %310 = vmatprep.subr.mxu0 0.0
  %311 = vmatpush1.msra.mxu0 0.0
  %312 = vmatprep.subr.mxu0 0.0
  %313 = vmatpush1.msra.mxu0 0.0
  %314 = vmatprep.subr.mxu0 0.0
  %315 = vmatpush1.msra.mxu0 0.0
  %316 = vmatprep.subr.mxu0 0.0
  %317 = vmatpush1.msra.mxu0 0.0
  %318 = vmatprep.subr.mxu0 0.0
  %319 = vmatpush1.msra.mxu0 0.0
  %320 = vmatprep.subr.mxu0 0.0
  %321 = vmatpush1.msra.mxu0 0.0
  %322 = vmatprep.subr.mxu0 0.0
  %323 = vmatpush1.msra.mxu0 0.0
  %324 = vmatprep.subr.mxu0 0.0
  %325 = vmatpush1.msra.mxu0 0.0
  %326 = vmatprep.subr.mxu0 0.0
  %327 = vmatpush1.msra.mxu0 0.0
  %328 = vmatprep.subr.mxu0 0.0
  %329 = vmatpush1.msra.mxu0 0.0
  %330 = vmatprep.subr.mxu0 0.0
  %331 = vmatpush1.msra.mxu0 0.0
  %332 = vmatprep.subr.mxu0 0.0
  %333 = vmatpush1.msra.mxu0 0.0
  %334 = vmatprep.subr.mxu0 0.0
  %335 = vmatpush1.msra.mxu0 0.0
  %336 = vmatprep.subr.mxu0 0.0
  %337 = vmatpush1.msra.mxu0 0.0
  %338 = vmatprep.subr.mxu0 0.0
  %339 = vmatpush1.msra.mxu0 0.0
  %340 = vmatprep.subr.mxu0 0.0
  %341 = vmatpush1.msra.mxu0 0.0
  %342 = vmatprep.subr.mxu0 0.0
  %343 = vmatpush1.msra.mxu0 0.0
  %344 = vmatprep.subr.mxu0 0.0
  %345 = vmatpush1.msra.mxu0 0.0
  %346 = vmatprep.subr.mxu0 0.0
  %347 = vmatpush1.msra.mxu0 0.0
  %348 = vmatprep.subr.mxu0 0.0
  %349 = vmatpush1.msra.mxu0 0.0
  %350 = vmatprep.mubr.f32.mxu0 0.0
  %351 = vmatmul.mubr.f32.gmra.mrb[0].mxu0 %v275
  %v352 = vpop.f32.mrb[0].mxu0
  %v353 = vadd.f32 0.0, %v352
  %v354 = vpop.f32.mrb[0].mxu0
  %355 = vmatprep.mubr.f32.mxu0 0.0
  %356 = vmatmul.mubr.f32.gmra.mrb[0].mxu0 %v278
  %v357 = vpop.f32.mrb[0].mxu0
  %v358 = vadd.f32 0.0, %v357
  %v359 = vpop.f32.mrb[0].mxu0
  %360 = vmatprep.mubr.f32.mxu0 0.0
  %361 = vmatmul.mubr.f32.gmra.mrb[0].mxu0 %v281
  %v362 = vpop.f32.mrb[0].mxu0
  %v363 = vadd.f32 0.0, %v362
  %v364 = vpop.f32.mrb[0].mxu0
  %365 = vmatprep.mubr.f32.mxu0 0.0
  %366 = vmatmul.mubr.f32.gmra.mrb[0].mxu0 %v284
  %v367 = vpop.f32.mrb[0].mxu0
  %v368 = vadd.f32 0.0, %v367
  %v369 = vpop.f32.mrb[0].mxu0
  %370 = vdwg.mxu0
  %v372 = vsel %vm273, %v253, 0
  %v375 = vsel %vm273, %v254, 0
  %v378 = vsel %vm273, %v255, 0
  %v381 = vsel %vm273, %v256, 0
  %383 = vmatprep.subr.mxu0 0.0
  %384 = vmatpush1.msra.mxu0 %v257
  %385 = vmatprep.subr.mxu0 0.0
  %386 = vmatpush1.msra.mxu0 %v258
  %387 = vmatprep.subr.mxu0 0.0
  %388 = vmatpush1.msra.mxu0 %v259
  %389 = vmatprep.subr.mxu0 0.0
  %390 = vmatpush1.msra.mxu0 %v260
  %391 = vmatprep.subr.mxu0 0.0
  %392 = vmatpush1.msra.mxu0 %v261
  %393 = vmatprep.subr.mxu0 0.0
  %394 = vmatpush1.msra.mxu0 %v262
  %395 = vmatprep.subr.mxu0 0.0
  %396 = vmatpush1.msra.mxu0 %v263
  %397 = vmatprep.subr.mxu0 0.0
  %398 = vmatpush1.msra.mxu0 %v264
  %399 = vmatprep.subr.mxu0 0.0
  %400 = vmatpush1.msra.mxu0 0.0
  %401 = vmatprep.subr.mxu0 0.0
  %402 = vmatpush1.msra.mxu0 0.0
  %403 = vmatprep.subr.mxu0 0.0
  %404 = vmatpush1.msra.mxu0 0.0
  %405 = vmatprep.subr.mxu0 0.0
  %406 = vmatpush1.msra.mxu0 0.0
  %407 = vmatprep.subr.mxu0 0.0
  %408 = vmatpush1.msra.mxu0 0.0
  %409 = vmatprep.subr.mxu0 0.0
  %410 = vmatpush1.msra.mxu0 0.0
  %411 = vmatprep.subr.mxu0 0.0
  %412 = vmatpush1.msra.mxu0 0.0
  %413 = vmatprep.subr.mxu0 0.0
  %414 = vmatpush1.msra.mxu0 0.0
  %415 = vmatprep.subr.mxu0 0.0
  %416 = vmatpush1.msra.mxu0 0.0
  %417 = vmatprep.subr.mxu0 0.0
  %418 = vmatpush1.msra.mxu0 0.0
  %419 = vmatprep.subr.mxu0 0.0
  %420 = vmatpush1.msra.mxu0 0.0
  %421 = vmatprep.subr.mxu0 0.0
  %422 = vmatpush1.msra.mxu0 0.0
  %423 = vmatprep.subr.mxu0 0.0
  %424 = vmatpush1.msra.mxu0 0.0
  %425 = vmatprep.subr.mxu0 0.0
  %426 = vmatpush1.msra.mxu0 0.0
  %427 = vmatprep.subr.mxu0 0.0
  %428 = vmatpush1.msra.mxu0 0.0
  %429 = vmatprep.subr.mxu0 0.0
  %430 = vmatpush1.msra.mxu0 0.0
  %431 = vmatprep.subr.mxu0 0.0
  %432 = vmatpush1.msra.mxu0 0.0
  %433 = vmatprep.subr.mxu0 0.0
  %434 = vmatpush1.msra.mxu0 0.0
  %435 = vmatprep.subr.mxu0 0.0
  %436 = vmatpush1.msra.mxu0 0.0
  %437 = vmatprep.subr.mxu0 0.0
  %438 = vmatpush1.msra.mxu0 0.0
  %439 = vmatprep.subr.mxu0 0.0
  %440 = vmatpush1.msra.mxu0 0.0
  %441 = vmatprep.subr.mxu0 0.0
  %442 = vmatpush1.msra.mxu0 0.0
  %443 = vmatprep.subr.mxu0 0.0
  %444 = vmatpush1.msra.mxu0 0.0
  %445 = vmatprep.subr.mxu0 0.0
  %446 = vmatpush1.msra.mxu0 0.0
  %447 = vmatprep.mubr.f32.mxu0 0.0
  %448 = vmatmul.mubr.f32.gmra.mrb[0].mxu0 %v372
  %v449 = vpop.f32.mrb[0].mxu0
  %v450 = vadd.f32 %v353, %v449
  %v451 = vpop.f32.mrb[0].mxu0
  %452 = vmatprep.mubr.f32.mxu0 0.0
  %453 = vmatmul.mubr.f32.gmra.mrb[0].mxu0 %v375
  %v454 = vpop.f32.mrb[0].mxu0
  %v455 = vadd.f32 %v358, %v454
  %v456 = vpop.f32.mrb[0].mxu0
  %457 = vmatprep.mubr.f32.mxu0 0.0
  %458 = vmatmul.mubr.f32.gmra.mrb[0].mxu0 %v378
  %v459 = vpop.f32.mrb[0].mxu0
  %v460 = vadd.f32 %v363, %v459
  %v461 = vpop.f32.mrb[0].mxu0
  %462 = vmatprep.mubr.f32.mxu0 0.0
  %463 = vmatmul.mubr.f32.gmra.mrb[0].mxu0 %v381
  %v464 = vpop.f32.mrb[0].mxu0
  %v465 = vadd.f32 %v368, %v464
  %v466 = vpop.f32.mrb[0].mxu0
  %467 = vdwg.mxu0
  %v468 = vld [vmem:[%s4] sm:$0xff]
  %v469 = vld [vmem:[%s4 + $0x8] sm:$0xff]
  %v470 = vld [vmem:[%s4 + $0x10] sm:$0xff]
  %v471 = vld [vmem:[%s4 + $0x18] sm:$0xff]
  %s472 = scalar_lea.vmem %s5, 64
  %v473 = vld [vmem:[%s472] sm:$0xff]
  %v474 = vld [vmem:[%s472 + $0x8] sm:$0xff]
  %v475 = vld [vmem:[%s472 + $0x10] sm:$0xff]
  %v476 = vld [vmem:[%s472 + $0x18] sm:$0xff]
  %v477 = vld [vmem:[%s472 + $0x20] sm:$0xff]
  %v478 = vld [vmem:[%s472 + $0x28] sm:$0xff]
  %v479 = vld [vmem:[%s472 + $0x30] sm:$0xff]
  %v480 = vld [vmem:[%s472 + $0x38] sm:$0xff]
  %s481 = scalar_lea.vmem %s6, 64
  %v482 = vld [vmem:[%s481] sm:$0xff]
  %v483 = vld [vmem:[%s481 + $0x8] sm:$0xff]
  %v484 = vld [vmem:[%s481 + $0x10] sm:$0xff]
  %v485 = vld [vmem:[%s481 + $0x18] sm:$0xff]
  %v486 = vld [vmem:[%s481 + $0x20] sm:$0xff]
  %v487 = vld [vmem:[%s481 + $0x28] sm:$0xff]
  %v488 = vld [vmem:[%s481 + $0x30] sm:$0xff]
  %v489 = vld [vmem:[%s481 + $0x38] sm:$0xff]
  %490 = vmatprep.subr.mxu0 0.0
  %491 = vmatpush1.msra.mxu0 %v482
  %492 = vmatprep.subr.mxu0 0.0
  %493 = vmatpush1.msra.mxu0 %v483
  %494 = vmatprep.subr.mxu0 0.0
  %495 = vmatpush1.msra.mxu0 %v484
  %496 = vmatprep.subr.mxu0 0.0
  %497 = vmatpush1.msra.mxu0 %v485
  %498 = vmatprep.subr.mxu0 0.0
  %499 = vmatpush1.msra.mxu0 %v486
  %500 = vmatprep.subr.mxu0 0.0
  %501 = vmatpush1.msra.mxu0 %v487
  %502 = vmatprep.subr.mxu0 0.0
  %503 = vmatpush1.msra.mxu0 %v488
  %504 = vmatprep.subr.mxu0 0.0
  %505 = vmatpush1.msra.mxu0 %v489
  %506 = vmatprep.subr.mxu0 0.0
  %507 = vmatpush1.msra.mxu0 0.0
  %508 = vmatprep.subr.mxu0 0.0
  %509 = vmatpush1.msra.mxu0 0.0
  %510 = vmatprep.subr.mxu0 0.0
  %511 = vmatpush1.msra.mxu0 0.0
  %512 = vmatprep.subr.mxu0 0.0
  %513 = vmatpush1.msra.mxu0 0.0
  %514 = vmatprep.subr.mxu0 0.0
  %515 = vmatpush1.msra.mxu0 0.0
  %516 = vmatprep.subr.mxu0 0.0
  %517 = vmatpush1.msra.mxu0 0.0
  %518 = vmatprep.subr.mxu0 0.0
  %519 = vmatpush1.msra.mxu0 0.0
  %520 = vmatprep.subr.mxu0 0.0
  %521 = vmatpush1.msra.mxu0 0.0
  %522 = vmatprep.subr.mxu0 0.0
  %523 = vmatpush1.msra.mxu0 0.0
  %524 = vmatprep.subr.mxu0 0.0
  %525 = vmatpush1.msra.mxu0 0.0
  %526 = vmatprep.subr.mxu0 0.0
  %527 = vmatpush1.msra.mxu0 0.0
  %528 = vmatprep.subr.mxu0 0.0
  %529 = vmatpush1.msra.mxu0 0.0
  %530 = vmatprep.subr.mxu0 0.0
  %531 = vmatpush1.msra.mxu0 0.0
  %532 = vmatprep.subr.mxu0 0.0
  %533 = vmatpush1.msra.mxu0 0.0
  %534 = vmatprep.subr.mxu0 0.0
  %535 = vmatpush1.msra.mxu0 0.0
  %536 = vmatprep.subr.mxu0 0.0
  %537 = vmatpush1.msra.mxu0 0.0
  %538 = vmatprep.subr.mxu0 0.0
  %539 = vmatpush1.msra.mxu0 0.0
  %540 = vmatprep.subr.mxu0 0.0
  %541 = vmatpush1.msra.mxu0 0.0
  %542 = vmatprep.subr.mxu0 0.0
  %543 = vmatpush1.msra.mxu0 0.0
  %544 = vmatprep.subr.mxu0 0.0
  %545 = vmatpush1.msra.mxu0 0.0
  %546 = vmatprep.subr.mxu0 0.0
  %547 = vmatpush1.msra.mxu0 0.0
  %548 = vmatprep.subr.mxu0 0.0
  %549 = vmatpush1.msra.mxu0 0.0
  %550 = vmatprep.subr.mxu0 0.0
  %551 = vmatpush1.msra.mxu0 0.0
  %552 = vmatprep.subr.mxu0 0.0
  %553 = vmatpush1.msra.mxu0 0.0
  %554 = vmatprep.mubr.f32.mxu0 0.0
  %555 = vmatmul.mubr.f32.gmra.mrb[0].mxu0 %v275
  %v556 = vpop.f32.mrb[0].mxu0
  %v557 = vadd.f32 0.0, %v556
  %v558 = vpop.f32.mrb[0].mxu0
  %559 = vmatprep.mubr.f32.mxu0 0.0
  %560 = vmatmul.mubr.f32.gmra.mrb[0].mxu0 %v278
  %v561 = vpop.f32.mrb[0].mxu0
  %v562 = vadd.f32 0.0, %v561
  %v563 = vpop.f32.mrb[0].mxu0
  %564 = vmatprep.mubr.f32.mxu0 0.0
  %565 = vmatmul.mubr.f32.gmra.mrb[0].mxu0 %v281
  %v566 = vpop.f32.mrb[0].mxu0
  %v567 = vadd.f32 0.0, %v566
  %v568 = vpop.f32.mrb[0].mxu0
  %569 = vmatprep.mubr.f32.mxu0 0.0
  %570 = vmatmul.mubr.f32.gmra.mrb[0].mxu0 %v284
  %v571 = vpop.f32.mrb[0].mxu0
  %v572 = vadd.f32 0.0, %v571
  %v573 = vpop.f32.mrb[0].mxu0
  %574 = vdwg.mxu0
  %575 = vmatprep.subr.mxu0 0.0
  %576 = vmatpush1.msra.mxu0 %v473
  %577 = vmatprep.subr.mxu0 0.0
  %578 = vmatpush1.msra.mxu0 %v474
  %579 = vmatprep.subr.mxu0 0.0
  %580 = vmatpush1.msra.mxu0 %v475
  %581 = vmatprep.subr.mxu0 0.0
  %582 = vmatpush1.msra.mxu0 %v476
  %583 = vmatprep.subr.mxu0 0.0
  %584 = vmatpush1.msra.mxu0 %v477
  %585 = vmatprep.subr.mxu0 0.0
  %586 = vmatpush1.msra.mxu0 %v478
  %587 = vmatprep.subr.mxu0 0.0
  %588 = vmatpush1.msra.mxu0 %v479
  %589 = vmatprep.subr.mxu0 0.0
  %590 = vmatpush1.msra.mxu0 %v480
  %591 = vmatprep.subr.mxu0 0.0
  %592 = vmatpush1.msra.mxu0 0.0
  %593 = vmatprep.subr.mxu0 0.0
  %594 = vmatpush1.msra.mxu0 0.0
  %595 = vmatprep.subr.mxu0 0.0
  %596 = vmatpush1.msra.mxu0 0.0
  %597 = vmatprep.subr.mxu0 0.0
  %598 = vmatpush1.msra.mxu0 0.0
  %599 = vmatprep.subr.mxu0 0.0
  %600 = vmatpush1.msra.mxu0 0.0
  %601 = vmatprep.subr.mxu0 0.0
  %602 = vmatpush1.msra.mxu0 0.0
  %603 = vmatprep.subr.mxu0 0.0
  %604 = vmatpush1.msra.mxu0 0.0
  %605 = vmatprep.subr.mxu0 0.0
  %606 = vmatpush1.msra.mxu0 0.0
  %607 = vmatprep.subr.mxu0 0.0
  %608 = vmatpush1.msra.mxu0 0.0
  %609 = vmatprep.subr.mxu0 0.0
  %610 = vmatpush1.msra.mxu0 0.0
  %611 = vmatprep.subr.mxu0 0.0
  %612 = vmatpush1.msra.mxu0 0.0
  %613 = vmatprep.subr.mxu0 0.0
  %614 = vmatpush1.msra.mxu0 0.0
  %615 = vmatprep.subr.mxu0 0.0
  %616 = vmatpush1.msra.mxu0 0.0
  %617 = vmatprep.subr.mxu0 0.0
  %618 = vmatpush1.msra.mxu0 0.0
  %619 = vmatprep.subr.mxu0 0.0
  %620 = vmatpush1.msra.mxu0 0.0
  %621 = vmatprep.subr.mxu0 0.0
  %622 = vmatpush1.msra.mxu0 0.0
  %623 = vmatprep.subr.mxu0 0.0
  %624 = vmatpush1.msra.mxu0 0.0
  %625 = vmatprep.subr.mxu0 0.0
  %626 = vmatpush1.msra.mxu0 0.0
  %627 = vmatprep.subr.mxu0 0.0
  %628 = vmatpush1.msra.mxu0 0.0
  %629 = vmatprep.subr.mxu0 0.0
  %630 = vmatpush1.msra.mxu0 0.0
  %631 = vmatprep.subr.mxu0 0.0
  %632 = vmatpush1.msra.mxu0 0.0
  %633 = vmatprep.subr.mxu0 0.0
  %634 = vmatpush1.msra.mxu0 0.0
  %635 = vmatprep.subr.mxu0 0.0
  %636 = vmatpush1.msra.mxu0 0.0
  %637 = vmatprep.subr.mxu0 0.0
  %638 = vmatpush1.msra.mxu0 0.0
  %639 = vmatprep.mubr.f32.mxu0 0.0
  %640 = vmatmul.mubr.f32.gmra.mrb[0].mxu0 %v372
  %v641 = vpop.f32.mrb[0].mxu0
  %v642 = vadd.f32 %v557, %v641
  %v643 = vpop.f32.mrb[0].mxu0
  %644 = vmatprep.mubr.f32.mxu0 0.0
  %645 = vmatmul.mubr.f32.gmra.mrb[0].mxu0 %v375
  %v646 = vpop.f32.mrb[0].mxu0
  %v647 = vadd.f32 %v562, %v646
  %v648 = vpop.f32.mrb[0].mxu0
  %649 = vmatprep.mubr.f32.mxu0 0.0
  %650 = vmatmul.mubr.f32.gmra.mrb[0].mxu0 %v378
  %v651 = vpop.f32.mrb[0].mxu0
  %v652 = vadd.f32 %v567, %v651
  %v653 = vpop.f32.mrb[0].mxu0
  %654 = vmatprep.mubr.f32.mxu0 0.0
  %655 = vmatmul.mubr.f32.gmra.mrb[0].mxu0 %v381
  %v656 = vpop.f32.mrb[0].mxu0
  %v657 = vadd.f32 %v572, %v656
  %v658 = vpop.f32.mrb[0].mxu0
  %659 = vdwg.mxu0
  %v661 = vsel %vm155, %v468, 0
  %v664 = vsel %vm155, %v469, 0
  %v667 = vsel %vm155, %v470, 0
  %v670 = vsel %vm155, %v471, 0
  %672 = vmatprep.subr.mxu0 0.0
  %673 = vmatpush1.msra.mxu0 %v450
  %674 = vmatprep.subr.mxu0 0.0
  %675 = vmatpush1.msra.mxu0 %v455
  %676 = vmatprep.subr.mxu0 0.0
  %677 = vmatpush1.msra.mxu0 %v460
  %678 = vmatprep.subr.mxu0 0.0
  %679 = vmatpush1.msra.mxu0 %v465
  %680 = vmatprep.subr.mxu0 0.0
  %681 = vmatpush1.msra.mxu0 0.0
  %682 = vmatprep.subr.mxu0 0.0
  %683 = vmatpush1.msra.mxu0 0.0
  %684 = vmatprep.subr.mxu0 0.0
  %685 = vmatpush1.msra.mxu0 0.0
  %686 = vmatprep.subr.mxu0 0.0
  %687 = vmatpush1.msra.mxu0 0.0
  %688 = vmatprep.subr.mxu0 0.0
  %689 = vmatpush1.msra.mxu0 0.0
  %690 = vmatprep.subr.mxu0 0.0
  %691 = vmatpush1.msra.mxu0 0.0
  %692 = vmatprep.subr.mxu0 0.0
  %693 = vmatpush1.msra.mxu0 0.0
  %694 = vmatprep.subr.mxu0 0.0
  %695 = vmatpush1.msra.mxu0 0.0
  %696 = vmatprep.subr.mxu0 0.0
  %697 = vmatpush1.msra.mxu0 0.0
  %698 = vmatprep.subr.mxu0 0.0
  %699 = vmatpush1.msra.mxu0 0.0
  %700 = vmatprep.subr.mxu0 0.0
  %701 = vmatpush1.msra.mxu0 0.0
  %702 = vmatprep.subr.mxu0 0.0
  %703 = vmatpush1.msra.mxu0 0.0
  %704 = vmatprep.subr.mxu0 0.0
  %705 = vmatpush1.msra.mxu0 0.0
  %706 = vmatprep.subr.mxu0 0.0
  %707 = vmatpush1.msra.mxu0 0.0
  %708 = vmatprep.subr.mxu0 0.0
  %709 = vmatpush1.msra.mxu0 0.0
  %710 = vmatprep.subr.mxu0 0.0
  %711 = vmatpush1.msra.mxu0 0.0
  %712 = vmatprep.subr.mxu0 0.0
  %713 = vmatpush1.msra.mxu0 0.0
  %714 = vmatprep.subr.mxu0 0.0
  %715 = vmatpush1.msra.mxu0 0.0
  %716 = vmatprep.subr.mxu0 0.0
  %717 = vmatpush1.msra.mxu0 0.0
  %718 = vmatprep.subr.mxu0 0.0
  %719 = vmatpush1.msra.mxu0 0.0
  %720 = vmatprep.subr.mxu0 0.0
  %721 = vmatpush1.msra.mxu0 0.0
  %722 = vmatprep.subr.mxu0 0.0
  %723 = vmatpush1.msra.mxu0 0.0
  %724 = vmatprep.subr.mxu0 0.0
  %725 = vmatpush1.msra.mxu0 0.0
  %726 = vmatprep.subr.mxu0 0.0
  %727 = vmatpush1.msra.mxu0 0.0
  %728 = vmatprep.subr.mxu0 0.0
  %729 = vmatpush1.msra.mxu0 0.0
  %730 = vmatprep.subr.mxu0 0.0
  %731 = vmatpush1.msra.mxu0 0.0
  %732 = vmatprep.subr.mxu0 0.0
  %733 = vmatpush1.msra.mxu0 0.0
  %734 = vmatprep.subr.mxu0 0.0
  %735 = vmatpush1.msra.mxu0 0.0
  %736 = vmatprep.mubr.f32.mxu0 0.0
  %737 = vmatmul.mubr.f32.gmra.mrb[0].mxu0 %v661
  %v738 = vpop.f32.mrb[0].mxu0
  %v739 = vadd.f32 %v642, %v738
  %v740 = vpop.f32.mrb[0].mxu0
  %741 = vmatprep.mubr.f32.mxu0 0.0
  %742 = vmatmul.mubr.f32.gmra.mrb[0].mxu0 %v664
  %v743 = vpop.f32.mrb[0].mxu0
  %v744 = vadd.f32 %v647, %v743
  %v745 = vpop.f32.mrb[0].mxu0
  %746 = vmatprep.mubr.f32.mxu0 0.0
  %747 = vmatmul.mubr.f32.gmra.mrb[0].mxu0 %v667
  %v748 = vpop.f32.mrb[0].mxu0
  %v749 = vadd.f32 %v652, %v748
  %v750 = vpop.f32.mrb[0].mxu0
  %751 = vmatprep.mubr.f32.mxu0 0.0
  %752 = vmatmul.mubr.f32.gmra.mrb[0].mxu0 %v670
  %v753 = vpop.f32.mrb[0].mxu0
  %v754 = vadd.f32 %v657, %v753
  %v755 = vpop.f32.mrb[0].mxu0
  %756 = vdwg.mxu0
  %s757 = scalar_lea.vmem %s5, 128
  %v758 = vld [vmem:[%s757] sm:$0xff]
  %v759 = vld [vmem:[%s757 + $0x8] sm:$0xff]
  %v760 = vld [vmem:[%s757 + $0x10] sm:$0xff]
  %v761 = vld [vmem:[%s757 + $0x18] sm:$0xff]
  %v762 = vld [vmem:[%s757 + $0x20] sm:$0xff]
  %v763 = vld [vmem:[%s757 + $0x28] sm:$0xff]
  %v764 = vld [vmem:[%s757 + $0x30] sm:$0xff]
  %v765 = vld [vmem:[%s757 + $0x38] sm:$0xff]
  %s766 = scalar_lea.vmem %s6, 128
  %v767 = vld [vmem:[%s766] sm:$0xff]
  %v768 = vld [vmem:[%s766 + $0x8] sm:$0xff]
  %v769 = vld [vmem:[%s766 + $0x10] sm:$0xff]
  %v770 = vld [vmem:[%s766 + $0x18] sm:$0xff]
  %v771 = vld [vmem:[%s766 + $0x20] sm:$0xff]
  %v772 = vld [vmem:[%s766 + $0x28] sm:$0xff]
  %v773 = vld [vmem:[%s766 + $0x30] sm:$0xff]
  %v774 = vld [vmem:[%s766 + $0x38] sm:$0xff]
  %775 = vmatprep.subr.mxu0 0.0
  %776 = vmatpush1.msra.mxu0 %v767
  %777 = vmatprep.subr.mxu0 0.0
  %778 = vmatpush1.msra.mxu0 %v768
  %779 = vmatprep.subr.mxu0 0.0
  %780 = vmatpush1.msra.mxu0 %v769
  %781 = vmatprep.subr.mxu0 0.0
  %782 = vmatpush1.msra.mxu0 %v770
  %783 = vmatprep.subr.mxu0 0.0
  %784 = vmatpush1.msra.mxu0 %v771
  %785 = vmatprep.subr.mxu0 0.0
  %786 = vmatpush1.msra.mxu0 %v772
  %787 = vmatprep.subr.mxu0 0.0
  %788 = vmatpush1.msra.mxu0 %v773
  %789 = vmatprep.subr.mxu0 0.0
  %790 = vmatpush1.msra.mxu0 %v774
  %791 = vmatprep.subr.mxu0 0.0
  %792 = vmatpush1.msra.mxu0 0.0
  %793 = vmatprep.subr.mxu0 0.0
  %794 = vmatpush1.msra.mxu0 0.0
  %795 = vmatprep.subr.mxu0 0.0
  %796 = vmatpush1.msra.mxu0 0.0
  %797 = vmatprep.subr.mxu0 0.0
  %798 = vmatpush1.msra.mxu0 0.0
  %799 = vmatprep.subr.mxu0 0.0
  %800 = vmatpush1.msra.mxu0 0.0
  %801 = vmatprep.subr.mxu0 0.0
  %802 = vmatpush1.msra.mxu0 0.0
  %803 = vmatprep.subr.mxu0 0.0
  %804 = vmatpush1.msra.mxu0 0.0
  %805 = vmatprep.subr.mxu0 0.0
  %806 = vmatpush1.msra.mxu0 0.0
  %807 = vmatprep.subr.mxu0 0.0
  %808 = vmatpush1.msra.mxu0 0.0
  %809 = vmatprep.subr.mxu0 0.0
  %810 = vmatpush1.msra.mxu0 0.0
  %811 = vmatprep.subr.mxu0 0.0
  %812 = vmatpush1.msra.mxu0 0.0
  %813 = vmatprep.subr.mxu0 0.0
  %814 = vmatpush1.msra.mxu0 0.0
  %815 = vmatprep.subr.mxu0 0.0
  %816 = vmatpush1.msra.mxu0 0.0
  %817 = vmatprep.subr.mxu0 0.0
  %818 = vmatpush1.msra.mxu0 0.0
  %819 = vmatprep.subr.mxu0 0.0
  %820 = vmatpush1.msra.mxu0 0.0
  %821 = vmatprep.subr.mxu0 0.0
  %822 = vmatpush1.msra.mxu0 0.0
  %823 = vmatprep.subr.mxu0 0.0
  %824 = vmatpush1.msra.mxu0 0.0
  %825 = vmatprep.subr.mxu0 0.0
  %826 = vmatpush1.msra.mxu0 0.0
  %827 = vmatprep.subr.mxu0 0.0
  %828 = vmatpush1.msra.mxu0 0.0
  %829 = vmatprep.subr.mxu0 0.0
  %830 = vmatpush1.msra.mxu0 0.0
  %831 = vmatprep.subr.mxu0 0.0
  %832 = vmatpush1.msra.mxu0 0.0
  %833 = vmatprep.subr.mxu0 0.0
  %834 = vmatpush1.msra.mxu0 0.0
  %835 = vmatprep.subr.mxu0 0.0
  %836 = vmatpush1.msra.mxu0 0.0
  %837 = vmatprep.subr.mxu0 0.0
  %838 = vmatpush1.msra.mxu0 0.0
  %839 = vmatprep.mubr.f32.mxu0 0.0
  %840 = vmatmul.mubr.f32.gmra.mrb[0].mxu0 %v275
  %v841 = vpop.f32.mrb[0].mxu0
  %v842 = vadd.f32 0.0, %v841
  %v843 = vpop.f32.mrb[0].mxu0
  %844 = vmatprep.mubr.f32.mxu0 0.0
  %845 = vmatmul.mubr.f32.gmra.mrb[0].mxu0 %v278
  %v846 = vpop.f32.mrb[0].mxu0
  %v847 = vadd.f32 0.0, %v846
  %v848 = vpop.f32.mrb[0].mxu0
  %849 = vmatprep.mubr.f32.mxu0 0.0
  %850 = vmatmul.mubr.f32.gmra.mrb[0].mxu0 %v281
  %v851 = vpop.f32.mrb[0].mxu0
  %v852 = vadd.f32 0.0, %v851
  %v853 = vpop.f32.mrb[0].mxu0
  %854 = vmatprep.mubr.f32.mxu0 0.0
  %855 = vmatmul.mubr.f32.gmra.mrb[0].mxu0 %v284
  %v856 = vpop.f32.mrb[0].mxu0
  %v857 = vadd.f32 0.0, %v856
  %v858 = vpop.f32.mrb[0].mxu0
  %859 = vdwg.mxu0
  %860 = vmatprep.subr.mxu0 0.0
  %861 = vmatpush1.msra.mxu0 %v758
  %862 = vmatprep.subr.mxu0 0.0
  %863 = vmatpush1.msra.mxu0 %v759
  %864 = vmatprep.subr.mxu0 0.0
  %865 = vmatpush1.msra.mxu0 %v760
  %866 = vmatprep.subr.mxu0 0.0
  %867 = vmatpush1.msra.mxu0 %v761
  %868 = vmatprep.subr.mxu0 0.0
  %869 = vmatpush1.msra.mxu0 %v762
  %870 = vmatprep.subr.mxu0 0.0
  %871 = vmatpush1.msra.mxu0 %v763
  %872 = vmatprep.subr.mxu0 0.0
  %873 = vmatpush1.msra.mxu0 %v764
  %874 = vmatprep.subr.mxu0 0.0
  %875 = vmatpush1.msra.mxu0 %v765
  %876 = vmatprep.subr.mxu0 0.0
  %877 = vmatpush1.msra.mxu0 0.0
  %878 = vmatprep.subr.mxu0 0.0
  %879 = vmatpush1.msra.mxu0 0.0
  %880 = vmatprep.subr.mxu0 0.0
  %881 = vmatpush1.msra.mxu0 0.0
  %882 = vmatprep.subr.mxu0 0.0
  %883 = vmatpush1.msra.mxu0 0.0
  %884 = vmatprep.subr.mxu0 0.0
  %885 = vmatpush1.msra.mxu0 0.0
  %886 = vmatprep.subr.mxu0 0.0
  %887 = vmatpush1.msra.mxu0 0.0
  %888 = vmatprep.subr.mxu0 0.0
  %889 = vmatpush1.msra.mxu0 0.0
  %890 = vmatprep.subr.mxu0 0.0
  %891 = vmatpush1.msra.mxu0 0.0
  %892 = vmatprep.subr.mxu0 0.0
  %893 = vmatpush1.msra.mxu0 0.0
  %894 = vmatprep.subr.mxu0 0.0
  %895 = vmatpush1.msra.mxu0 0.0
  %896 = vmatprep.subr.mxu0 0.0
  %897 = vmatpush1.msra.mxu0 0.0
  %898 = vmatprep.subr.mxu0 0.0
  %899 = vmatpush1.msra.mxu0 0.0
  %900 = vmatprep.subr.mxu0 0.0
  %901 = vmatpush1.msra.mxu0 0.0
  %902 = vmatprep.subr.mxu0 0.0
  %903 = vmatpush1.msra.mxu0 0.0
  %904 = vmatprep.subr.mxu0 0.0
  %905 = vmatpush1.msra.mxu0 0.0
  %906 = vmatprep.subr.mxu0 0.0
  %907 = vmatpush1.msra.mxu0 0.0
  %908 = vmatprep.subr.mxu0 0.0
  %909 = vmatpush1.msra.mxu0 0.0
  %910 = vmatprep.subr.mxu0 0.0
  %911 = vmatpush1.msra.mxu0 0.0
  %912 = vmatprep.subr.mxu0 0.0
  %913 = vmatpush1.msra.mxu0 0.0
  %914 = vmatprep.subr.mxu0 0.0
  %915 = vmatpush1.msra.mxu0 0.0
  %916 = vmatprep.subr.mxu0 0.0
  %917 = vmatpush1.msra.mxu0 0.0
  %918 = vmatprep.subr.mxu0 0.0
  %919 = vmatpush1.msra.mxu0 0.0
  %920 = vmatprep.subr.mxu0 0.0
  %921 = vmatpush1.msra.mxu0 0.0
  %922 = vmatprep.subr.mxu0 0.0
  %923 = vmatpush1.msra.mxu0 0.0
  %924 = vmatprep.mubr.f32.mxu0 0.0
  %925 = vmatmul.mubr.f32.gmra.mrb[0].mxu0 %v372
  %v926 = vpop.f32.mrb[0].mxu0
  %v927 = vadd.f32 %v842, %v926
  %v928 = vpop.f32.mrb[0].mxu0
  %929 = vmatprep.mubr.f32.mxu0 0.0
  %930 = vmatmul.mubr.f32.gmra.mrb[0].mxu0 %v375
  %v931 = vpop.f32.mrb[0].mxu0
  %v932 = vadd.f32 %v847, %v931
  %v933 = vpop.f32.mrb[0].mxu0
  %934 = vmatprep.mubr.f32.mxu0 0.0
  %935 = vmatmul.mubr.f32.gmra.mrb[0].mxu0 %v378
  %v936 = vpop.f32.mrb[0].mxu0
  %v937 = vadd.f32 %v852, %v936
  %v938 = vpop.f32.mrb[0].mxu0
  %939 = vmatprep.mubr.f32.mxu0 0.0
  %940 = vmatmul.mubr.f32.gmra.mrb[0].mxu0 %v381
  %v941 = vpop.f32.mrb[0].mxu0
  %v942 = vadd.f32 %v857, %v941
  %v943 = vpop.f32.mrb[0].mxu0
  %944 = vdwg.mxu0
  %s945 = scalar_lea.vmem %s4, 64
  %v946 = vld [vmem:[%s945] sm:$0xff]
  %v947 = vld [vmem:[%s945 + $0x8] sm:$0xff]
  %v948 = vld [vmem:[%s945 + $0x10] sm:$0xff]
  %v949 = vld [vmem:[%s945 + $0x18] sm:$0xff]
  %v951 = vsel %vm155, %v946, 0
  %v954 = vsel %vm155, %v947, 0
  %v957 = vsel %vm155, %v948, 0
  %v960 = vsel %vm155, %v949, 0
  %962 = vmatprep.subr.mxu0 0.0
  %963 = vmatpush1.msra.mxu0 %v927
  %964 = vmatprep.subr.mxu0 0.0
  %965 = vmatpush1.msra.mxu0 %v932
  %966 = vmatprep.subr.mxu0 0.0
  %967 = vmatpush1.msra.mxu0 %v937
  %968 = vmatprep.subr.mxu0 0.0
  %969 = vmatpush1.msra.mxu0 %v942
  %970 = vmatprep.subr.mxu0 0.0
  %971 = vmatpush1.msra.mxu0 0.0
  %972 = vmatprep.subr.mxu0 0.0
  %973 = vmatpush1.msra.mxu0 0.0
  %974 = vmatprep.subr.mxu0 0.0
  %975 = vmatpush1.msra.mxu0 0.0
  %976 = vmatprep.subr.mxu0 0.0
  %977 = vmatpush1.msra.mxu0 0.0
  %978 = vmatprep.subr.mxu0 0.0
  %979 = vmatpush1.msra.mxu0 0.0
  %980 = vmatprep.subr.mxu0 0.0
  %981 = vmatpush1.msra.mxu0 0.0
  %982 = vmatprep.subr.mxu0 0.0
  %983 = vmatpush1.msra.mxu0 0.0
  %984 = vmatprep.subr.mxu0 0.0
  %985 = vmatpush1.msra.mxu0 0.0
  %986 = vmatprep.subr.mxu0 0.0
  %987 = vmatpush1.msra.mxu0 0.0
  %988 = vmatprep.subr.mxu0 0.0
  %989 = vmatpush1.msra.mxu0 0.0
  %990 = vmatprep.subr.mxu0 0.0
  %991 = vmatpush1.msra.mxu0 0.0
  %992 = vmatprep.subr.mxu0 0.0
  %993 = vmatpush1.msra.mxu0 0.0
  %994 = vmatprep.subr.mxu0 0.0
  %995 = vmatpush1.msra.mxu0 0.0
  %996 = vmatprep.subr.mxu0 0.0
  %997 = vmatpush1.msra.mxu0 0.0
  %998 = vmatprep.subr.mxu0 0.0
  %999 = vmatpush1.msra.mxu0 0.0
  %1000 = vmatprep.subr.mxu0 0.0
  %1001 = vmatpush1.msra.mxu0 0.0
  %1002 = vmatprep.subr.mxu0 0.0
  %1003 = vmatpush1.msra.mxu0 0.0
  %1004 = vmatprep.subr.mxu0 0.0
  %1005 = vmatpush1.msra.mxu0 0.0
  %1006 = vmatprep.subr.mxu0 0.0
  %1007 = vmatpush1.msra.mxu0 0.0
  %1008 = vmatprep.subr.mxu0 0.0
  %1009 = vmatpush1.msra.mxu0 0.0
  %1010 = vmatprep.subr.mxu0 0.0
  %1011 = vmatpush1.msra.mxu0 0.0
  %1012 = vmatprep.subr.mxu0 0.0
  %1013 = vmatpush1.msra.mxu0 0.0
  %1014 = vmatprep.subr.mxu0 0.0
  %1015 = vmatpush1.msra.mxu0 0.0
  %1016 = vmatprep.subr.mxu0 0.0
  %1017 = vmatpush1.msra.mxu0 0.0
  %1018 = vmatprep.subr.mxu0 0.0
  %1019 = vmatpush1.msra.mxu0 0.0
  %1020 = vmatprep.subr.mxu0 0.0
  %1021 = vmatpush1.msra.mxu0 0.0
  %1022 = vmatprep.subr.mxu0 0.0
  %1023 = vmatpush1.msra.mxu0 0.0
  %1024 = vmatprep.subr.mxu0 0.0
  %1025 = vmatpush1.msra.mxu0 0.0
  %1026 = vmatprep.mubr.f32.mxu0 0.0
  %1027 = vmatmul.mubr.f32.gmra.mrb[0].mxu0 %v951
  %v1028 = vpop.f32.mrb[0].mxu0
  %v1029 = vadd.f32 0.0, %v1028
  %v1030 = vpop.f32.mrb[0].mxu0
  %1031 = vmatprep.mubr.f32.mxu0 0.0
  %1032 = vmatmul.mubr.f32.gmra.mrb[0].mxu0 %v954
  %v1033 = vpop.f32.mrb[0].mxu0
  %v1034 = vadd.f32 0.0, %v1033
  %v1035 = vpop.f32.mrb[0].mxu0
  %1036 = vmatprep.mubr.f32.mxu0 0.0
  %1037 = vmatmul.mubr.f32.gmra.mrb[0].mxu0 %v957
  %v1038 = vpop.f32.mrb[0].mxu0
  %v1039 = vadd.f32 0.0, %v1038
  %v1040 = vpop.f32.mrb[0].mxu0
  %1041 = vmatprep.mubr.f32.mxu0 0.0
  %1042 = vmatmul.mubr.f32.gmra.mrb[0].mxu0 %v960
  %v1043 = vpop.f32.mrb[0].mxu0
  %v1044 = vadd.f32 0.0, %v1043
  %v1045 = vpop.f32.mrb[0].mxu0
  %1046 = vdwg.mxu0
  %v1047 = vadd.f32 %v739, %v1029
  %v1048 = vadd.f32 %v744, %v1034
  %v1049 = vadd.f32 %v749, %v1039
  %v1050 = vadd.f32 %v754, %v1044
  %v1051 = vsel %vm273, %v1047, 0.0
  %v1052 = vsel %vm273, %v1048, 0.0
  %v1053 = vadd.f32 %v1051, %v1052
  %v1054 = vsel %vm273, %v1049, 0.0
  %v1055 = vadd.f32 %v1053, %v1054
  %v1056 = vsel %vm273, %v1050, 0.0
  %v1057 = vadd.f32 %v1055, %v1056
  %v1058 = vrot.slane %v1057, 4
  %v1059 = vadd.f32 %v1057, %v1058
  %v1060 = vrot.slane %v1059, 2
  %v1061 = vadd.f32 %v1059, %v1060
  %v1062 = vrot.slane %v1061, 1
  %v1063 = vadd.f32 %v1061, %v1062
  %v1064 = vmul.f32 %v1047, %v1047
  %v1065 = vmul.f32 %v1048, %v1048
  %v1066 = vmul.f32 %v1049, %v1049
  %v1067 = vmul.f32 %v1050, %v1050
  %v1068 = vsel %vm273, %v1064, 0.0
  %v1069 = vsel %vm273, %v1065, 0.0
  %v1070 = vadd.f32 %v1068, %v1069
  %v1071 = vsel %vm273, %v1066, 0.0
  %v1072 = vadd.f32 %v1070, %v1071
  %v1073 = vsel %vm273, %v1067, 0.0
  %v1074 = vadd.f32 %v1072, %v1073
  %v1075 = vrot.slane %v1074, 4
  %v1076 = vadd.f32 %v1074, %v1075
  %v1077 = vrot.slane %v1076, 2
  %v1078 = vadd.f32 %v1076, %v1077
  %v1079 = vrot.slane %v1078, 1
  %v1080 = vadd.f32 %v1078, %v1079
  %v1081 = vld [vmem:[%s8] sm:$0xff]
  %v1082 = vld [vmem:[%s8 + $0x8] sm:$0xff]
  %v1083 = vld [vmem:[%s8 + $0x10] sm:$0xff]
  %v1084 = vld [vmem:[%s8 + $0x18] sm:$0xff]
  %v1085 = vld [vmem:[%s8 + $0x20] sm:$0xff]
  %v1086 = vld [vmem:[%s8 + $0x28] sm:$0xff]
  %v1087 = vld [vmem:[%s8 + $0x30] sm:$0xff]
  %v1088 = vld [vmem:[%s8 + $0x38] sm:$0xff]
  %v1090 = vsel %vm273, %v1063, 0
  %1092 = vmatprep.subr.mxu0 0.0
  %1093 = vmatpush1.msra.mxu0 %v1081
  %1094 = vmatprep.subr.mxu0 0.0
  %1095 = vmatpush1.msra.mxu0 %v1082
  %1096 = vmatprep.subr.mxu0 0.0
  %1097 = vmatpush1.msra.mxu0 %v1083
  %1098 = vmatprep.subr.mxu0 0.0
  %1099 = vmatpush1.msra.mxu0 %v1084
  %1100 = vmatprep.subr.mxu0 0.0
  %1101 = vmatpush1.msra.mxu0 %v1085
  %1102 = vmatprep.subr.mxu0 0.0
  %1103 = vmatpush1.msra.mxu0 %v1086
  %1104 = vmatprep.subr.mxu0 0.0
  %1105 = vmatpush1.msra.mxu0 %v1087
  %1106 = vmatprep.subr.mxu0 0.0
  %1107 = vmatpush1.msra.mxu0 %v1088
  %1108 = vmatprep.subr.mxu0 0.0
  %1109 = vmatpush1.msra.mxu0 0.0
  %1110 = vmatprep.subr.mxu0 0.0
  %1111 = vmatpush1.msra.mxu0 0.0
  %1112 = vmatprep.subr.mxu0 0.0
  %1113 = vmatpush1.msra.mxu0 0.0
  %1114 = vmatprep.subr.mxu0 0.0
  %1115 = vmatpush1.msra.mxu0 0.0
  %1116 = vmatprep.subr.mxu0 0.0
  %1117 = vmatpush1.msra.mxu0 0.0
  %1118 = vmatprep.subr.mxu0 0.0
  %1119 = vmatpush1.msra.mxu0 0.0
  %1120 = vmatprep.subr.mxu0 0.0
  %1121 = vmatpush1.msra.mxu0 0.0
  %1122 = vmatprep.subr.mxu0 0.0
  %1123 = vmatpush1.msra.mxu0 0.0
  %1124 = vmatprep.subr.mxu0 0.0
  %1125 = vmatpush1.msra.mxu0 0.0
  %1126 = vmatprep.subr.mxu0 0.0
  %1127 = vmatpush1.msra.mxu0 0.0
  %1128 = vmatprep.subr.mxu0 0.0
  %1129 = vmatpush1.msra.mxu0 0.0
  %1130 = vmatprep.subr.mxu0 0.0
  %1131 = vmatpush1.msra.mxu0 0.0
  %1132 = vmatprep.subr.mxu0 0.0
  %1133 = vmatpush1.msra.mxu0 0.0
  %1134 = vmatprep.subr.mxu0 0.0
  %1135 = vmatpush1.msra.mxu0 0.0
  %1136 = vmatprep.subr.mxu0 0.0
  %1137 = vmatpush1.msra.mxu0 0.0
  %1138 = vmatprep.subr.mxu0 0.0
  %1139 = vmatpush1.msra.mxu0 0.0
  %1140 = vmatprep.subr.mxu0 0.0
  %1141 = vmatpush1.msra.mxu0 0.0
  %1142 = vmatprep.subr.mxu0 0.0
  %1143 = vmatpush1.msra.mxu0 0.0
  %1144 = vmatprep.subr.mxu0 0.0
  %1145 = vmatpush1.msra.mxu0 0.0
  %1146 = vmatprep.subr.mxu0 0.0
  %1147 = vmatpush1.msra.mxu0 0.0
  %1148 = vmatprep.subr.mxu0 0.0
  %1149 = vmatpush1.msra.mxu0 0.0
  %1150 = vmatprep.subr.mxu0 0.0
  %1151 = vmatpush1.msra.mxu0 0.0
  %1152 = vmatprep.subr.mxu0 0.0
  %1153 = vmatpush1.msra.mxu0 0.0
  %1154 = vmatprep.subr.mxu0 0.0
  %1155 = vmatpush1.msra.mxu0 0.0
  %1156 = vmatprep.mubr.f32.mxu0 0.0
  %1157 = vmatmul.mubr.f32.gmra.mrb[0].mxu0 %v1090
  %v1158 = vpop.f32.mrb[0].mxu0
  %v1159 = vadd.f32 0.0, %v1158
  %v1160 = vpop.f32.mrb[0].mxu0
  %1161 = vdwg.mxu0
  %v1162 = vmul.f32 %v1159, 0.001953125
  %v1164 = vsel %vm273, %v1080, 0
  %1166 = vmatprep.subr.mxu0 0.0
  %1167 = vmatpush1.msra.mxu0 %v1081
  %1168 = vmatprep.subr.mxu0 0.0
  %1169 = vmatpush1.msra.mxu0 %v1082
  %1170 = vmatprep.subr.mxu0 0.0
  %1171 = vmatpush1.msra.mxu0 %v1083
  %1172 = vmatprep.subr.mxu0 0.0
  %1173 = vmatpush1.msra.mxu0 %v1084
  %1174 = vmatprep.subr.mxu0 0.0
  %1175 = vmatpush1.msra.mxu0 %v1085
  %1176 = vmatprep.subr.mxu0 0.0
  %1177 = vmatpush1.msra.mxu0 %v1086
  %1178 = vmatprep.subr.mxu0 0.0
  %1179 = vmatpush1.msra.mxu0 %v1087
  %1180 = vmatprep.subr.mxu0 0.0
  %1181 = vmatpush1.msra.mxu0 %v1088
  %1182 = vmatprep.subr.mxu0 0.0
  %1183 = vmatpush1.msra.mxu0 0.0
  %1184 = vmatprep.subr.mxu0 0.0
  %1185 = vmatpush1.msra.mxu0 0.0
  %1186 = vmatprep.subr.mxu0 0.0
  %1187 = vmatpush1.msra.mxu0 0.0
  %1188 = vmatprep.subr.mxu0 0.0
  %1189 = vmatpush1.msra.mxu0 0.0
  %1190 = vmatprep.subr.mxu0 0.0
  %1191 = vmatpush1.msra.mxu0 0.0
  %1192 = vmatprep.subr.mxu0 0.0
  %1193 = vmatpush1.msra.mxu0 0.0
  %1194 = vmatprep.subr.mxu0 0.0
  %1195 = vmatpush1.msra.mxu0 0.0
  %1196 = vmatprep.subr.mxu0 0.0
  %1197 = vmatpush1.msra.mxu0 0.0
  %1198 = vmatprep.subr.mxu0 0.0
  %1199 = vmatpush1.msra.mxu0 0.0
  %1200 = vmatprep.subr.mxu0 0.0
  %1201 = vmatpush1.msra.mxu0 0.0
  %1202 = vmatprep.subr.mxu0 0.0
  %1203 = vmatpush1.msra.mxu0 0.0
  %1204 = vmatprep.subr.mxu0 0.0
  %1205 = vmatpush1.msra.mxu0 0.0
  %1206 = vmatprep.subr.mxu0 0.0
  %1207 = vmatpush1.msra.mxu0 0.0
  %1208 = vmatprep.subr.mxu0 0.0
  %1209 = vmatpush1.msra.mxu0 0.0
  %1210 = vmatprep.subr.mxu0 0.0
  %1211 = vmatpush1.msra.mxu0 0.0
  %1212 = vmatprep.subr.mxu0 0.0
  %1213 = vmatpush1.msra.mxu0 0.0
  %1214 = vmatprep.subr.mxu0 0.0
  %1215 = vmatpush1.msra.mxu0 0.0
  %1216 = vmatprep.subr.mxu0 0.0
  %1217 = vmatpush1.msra.mxu0 0.0
  %1218 = vmatprep.subr.mxu0 0.0
  %1219 = vmatpush1.msra.mxu0 0.0
  %1220 = vmatprep.subr.mxu0 0.0
  %1221 = vmatpush1.msra.mxu0 0.0
  %1222 = vmatprep.subr.mxu0 0.0
  %1223 = vmatpush1.msra.mxu0 0.0
  %1224 = vmatprep.subr.mxu0 0.0
  %1225 = vmatpush1.msra.mxu0 0.0
  %1226 = vmatprep.subr.mxu0 0.0
  %1227 = vmatpush1.msra.mxu0 0.0
  %1228 = vmatprep.subr.mxu0 0.0
  %1229 = vmatpush1.msra.mxu0 0.0
  %1230 = vmatprep.mubr.f32.mxu0 0.0
  %1231 = vmatmul.mubr.f32.gmra.mrb[0].mxu0 %v1164
  %v1232 = vpop.f32.mrb[0].mxu0
  %v1233 = vadd.f32 0.0, %v1232
  %v1234 = vpop.f32.mrb[0].mxu0
  %1235 = vdwg.mxu0
  %v1236 = vmul.f32 %v1233, 0.001953125
  %v1237 = vmul.f32 %v1162, %v1162
  %v1238 = vsub.f32 %v1236, %v1237
  %v1239 = vadd.f32 %v1238, 1e-05
  %v1240 = vrsqrt.pop %v1239
  %v1241 = vld [vmem:[%s9] sm:$0x1]
  %v1242 = vmul.f32 %v1240, %v1241
  %v1243 = vld [vmem:[%s10] sm:$0x1]
  %v1244 = vmul.f32 %v1162, %v1242
  %v1245 = vsub.f32 %v1243, %v1244
  %v1246 = vlaneseq
  %v1247 = vshrl.u32 %v1246, 7
  %v1248 = vsub.s32 0, %v1247
  %v1249 = vrot.slane %v1242, %v1248
  %v1250 = vmul.f32 %v1047, %v1249
  %v1251 = vmul.f32 %v1048, %v1249
  %v1252 = vmul.f32 %v1049, %v1249
  %v1253 = vmul.f32 %v1050, %v1249
  %v1255 = vlaneseq
  %v1256 = vshrl.u32 %v1255, 7
  %v1257 = vsub.s32 0, %v1256
  %v1258 = vrot.slane %v1245, %v1257
  %v1260 = vadd.f32 %v1250, %v1258
  %v1261 = vadd.f32 %v1251, %v1258
  %v1262 = vadd.f32 %v1252, %v1258
  %v1263 = vadd.f32 %v1253, %v1258
  %v1264 = vmax.f32 %v1260, 0.0
  %v1265 = vmax.f32 %v1261, 0.0
  %v1266 = vmax.f32 %v1262, 0.0
  %v1267 = vmax.f32 %v1263, 0.0
  %v1268 = vld [vmem:[%s7] sm:$0xff]
  %v1269 = vld [vmem:[%s7 + $0x8] sm:$0xff]
  %v1270 = vld [vmem:[%s7 + $0x10] sm:$0xff]
  %v1271 = vld [vmem:[%s7 + $0x18] sm:$0xff]
  %v1272 = vld [vmem:[%s7 + $0x20] sm:$0xff]
  %v1273 = vld [vmem:[%s7 + $0x28] sm:$0xff]
  %v1274 = vld [vmem:[%s7 + $0x30] sm:$0xff]
  %v1275 = vld [vmem:[%s7 + $0x38] sm:$0xff]
  %v1277 = vsel %vm273, %v1264, 0
  %v1280 = vsel %vm273, %v1265, 0
  %v1283 = vsel %vm273, %v1266, 0
  %v1286 = vsel %vm273, %v1267, 0
  %1288 = vmatprep.subr.mxu0 0.0
  %1289 = vmatpush1.msra.mxu0 %v1268
  %1290 = vmatprep.subr.mxu0 0.0
  %1291 = vmatpush1.msra.mxu0 %v1269
  %1292 = vmatprep.subr.mxu0 0.0
  %1293 = vmatpush1.msra.mxu0 %v1270
  %1294 = vmatprep.subr.mxu0 0.0
  %1295 = vmatpush1.msra.mxu0 %v1271
  %1296 = vmatprep.subr.mxu0 0.0
  %1297 = vmatpush1.msra.mxu0 %v1272
  %1298 = vmatprep.subr.mxu0 0.0
  %1299 = vmatpush1.msra.mxu0 %v1273
  %1300 = vmatprep.subr.mxu0 0.0
  %1301 = vmatpush1.msra.mxu0 %v1274
  %1302 = vmatprep.subr.mxu0 0.0
  %1303 = vmatpush1.msra.mxu0 %v1275
  %1304 = vmatprep.subr.mxu0 0.0
  %1305 = vmatpush1.msra.mxu0 0.0
  %1306 = vmatprep.subr.mxu0 0.0
  %1307 = vmatpush1.msra.mxu0 0.0
  %1308 = vmatprep.subr.mxu0 0.0
  %1309 = vmatpush1.msra.mxu0 0.0
  %1310 = vmatprep.subr.mxu0 0.0
  %1311 = vmatpush1.msra.mxu0 0.0
  %1312 = vmatprep.subr.mxu0 0.0
  %1313 = vmatpush1.msra.mxu0 0.0
  %1314 = vmatprep.subr.mxu0 0.0
  %1315 = vmatpush1.msra.mxu0 0.0
  %1316 = vmatprep.subr.mxu0 0.0
  %1317 = vmatpush1.msra.mxu0 0.0
  %1318 = vmatprep.subr.mxu0 0.0
  %1319 = vmatpush1.msra.mxu0 0.0
  %1320 = vmatprep.subr.mxu0 0.0
  %1321 = vmatpush1.msra.mxu0 0.0
  %1322 = vmatprep.subr.mxu0 0.0
  %1323 = vmatpush1.msra.mxu0 0.0
  %1324 = vmatprep.subr.mxu0 0.0
  %1325 = vmatpush1.msra.mxu0 0.0
  %1326 = vmatprep.subr.mxu0 0.0
  %1327 = vmatpush1.msra.mxu0 0.0
  %1328 = vmatprep.subr.mxu0 0.0
  %1329 = vmatpush1.msra.mxu0 0.0
  %1330 = vmatprep.subr.mxu0 0.0
  %1331 = vmatpush1.msra.mxu0 0.0
  %1332 = vmatprep.subr.mxu0 0.0
  %1333 = vmatpush1.msra.mxu0 0.0
  %1334 = vmatprep.subr.mxu0 0.0
  %1335 = vmatpush1.msra.mxu0 0.0
  %1336 = vmatprep.subr.mxu0 0.0
  %1337 = vmatpush1.msra.mxu0 0.0
  %1338 = vmatprep.subr.mxu0 0.0
  %1339 = vmatpush1.msra.mxu0 0.0
  %1340 = vmatprep.subr.mxu0 0.0
  %1341 = vmatpush1.msra.mxu0 0.0
  %1342 = vmatprep.subr.mxu0 0.0
  %1343 = vmatpush1.msra.mxu0 0.0
  %1344 = vmatprep.subr.mxu0 0.0
  %1345 = vmatpush1.msra.mxu0 0.0
  %1346 = vmatprep.subr.mxu0 0.0
  %1347 = vmatpush1.msra.mxu0 0.0
  %1348 = vmatprep.subr.mxu0 0.0
  %1349 = vmatpush1.msra.mxu0 0.0
  %1350 = vmatprep.subr.mxu0 0.0
  %1351 = vmatpush1.msra.mxu0 0.0
  %1352 = vmatprep.mubr.f32.mxu0 0.0
  %1353 = vmatmul.mubr.f32.gmra.mrb[0].mxu0 %v1277
  %v1354 = vpop.f32.mrb[0].mxu0
  %v1355 = vadd.f32 0.0, %v1354
  %v1356 = vpop.f32.mrb[0].mxu0
  %1357 = vmatprep.mubr.f32.mxu0 0.0
  %1358 = vmatmul.mubr.f32.gmra.mrb[0].mxu0 %v1280
  %v1359 = vpop.f32.mrb[0].mxu0
  %v1360 = vadd.f32 0.0, %v1359
  %v1361 = vpop.f32.mrb[0].mxu0
  %1362 = vmatprep.mubr.f32.mxu0 0.0
  %1363 = vmatmul.mubr.f32.gmra.mrb[0].mxu0 %v1283
  %v1364 = vpop.f32.mrb[0].mxu0
  %v1365 = vadd.f32 0.0, %v1364
  %v1366 = vpop.f32.mrb[0].mxu0
  %1367 = vmatprep.mubr.f32.mxu0 0.0
  %1368 = vmatmul.mubr.f32.gmra.mrb[0].mxu0 %v1286
  %v1369 = vpop.f32.mrb[0].mxu0
  %v1370 = vadd.f32 0.0, %v1369
  %v1371 = vpop.f32.mrb[0].mxu0
  %1372 = vdwg.mxu0
  %s1373 = scalar_lea.vmem %s7, 64
  %v1374 = vld [vmem:[%s1373] sm:$0xff]
  %v1375 = vld [vmem:[%s1373 + $0x8] sm:$0xff]
  %v1376 = vld [vmem:[%s1373 + $0x10] sm:$0xff]
  %v1377 = vld [vmem:[%s1373 + $0x18] sm:$0xff]
  %v1378 = vld [vmem:[%s1373 + $0x20] sm:$0xff]
  %v1379 = vld [vmem:[%s1373 + $0x28] sm:$0xff]
  %v1380 = vld [vmem:[%s1373 + $0x30] sm:$0xff]
  %v1381 = vld [vmem:[%s1373 + $0x38] sm:$0xff]
  %1382 = vmatprep.subr.mxu0 0.0
  %1383 = vmatpush1.msra.mxu0 %v1374
  %1384 = vmatprep.subr.mxu0 0.0
  %1385 = vmatpush1.msra.mxu0 %v1375
  %1386 = vmatprep.subr.mxu0 0.0
  %1387 = vmatpush1.msra.mxu0 %v1376
  %1388 = vmatprep.subr.mxu0 0.0
  %1389 = vmatpush1.msra.mxu0 %v1377
  %1390 = vmatprep.subr.mxu0 0.0
  %1391 = vmatpush1.msra.mxu0 %v1378
  %1392 = vmatprep.subr.mxu0 0.0
  %1393 = vmatpush1.msra.mxu0 %v1379
  %1394 = vmatprep.subr.mxu0 0.0
  %1395 = vmatpush1.msra.mxu0 %v1380
  %1396 = vmatprep.subr.mxu0 0.0
  %1397 = vmatpush1.msra.mxu0 %v1381
  %1398 = vmatprep.subr.mxu0 0.0
  %1399 = vmatpush1.msra.mxu0 0.0
  %1400 = vmatprep.subr.mxu0 0.0
  %1401 = vmatpush1.msra.mxu0 0.0
  %1402 = vmatprep.subr.mxu0 0.0
  %1403 = vmatpush1.msra.mxu0 0.0
  %1404 = vmatprep.subr.mxu0 0.0
  %1405 = vmatpush1.msra.mxu0 0.0
  %1406 = vmatprep.subr.mxu0 0.0
  %1407 = vmatpush1.msra.mxu0 0.0
  %1408 = vmatprep.subr.mxu0 0.0
  %1409 = vmatpush1.msra.mxu0 0.0
  %1410 = vmatprep.subr.mxu0 0.0
  %1411 = vmatpush1.msra.mxu0 0.0
  %1412 = vmatprep.subr.mxu0 0.0
  %1413 = vmatpush1.msra.mxu0 0.0
  %1414 = vmatprep.subr.mxu0 0.0
  %1415 = vmatpush1.msra.mxu0 0.0
  %1416 = vmatprep.subr.mxu0 0.0
  %1417 = vmatpush1.msra.mxu0 0.0
  %1418 = vmatprep.subr.mxu0 0.0
  %1419 = vmatpush1.msra.mxu0 0.0
  %1420 = vmatprep.subr.mxu0 0.0
  %1421 = vmatpush1.msra.mxu0 0.0
  %1422 = vmatprep.subr.mxu0 0.0
  %1423 = vmatpush1.msra.mxu0 0.0
  %1424 = vmatprep.subr.mxu0 0.0
  %1425 = vmatpush1.msra.mxu0 0.0
  %1426 = vmatprep.subr.mxu0 0.0
  %1427 = vmatpush1.msra.mxu0 0.0
  %1428 = vmatprep.subr.mxu0 0.0
  %1429 = vmatpush1.msra.mxu0 0.0
  %1430 = vmatprep.subr.mxu0 0.0
  %1431 = vmatpush1.msra.mxu0 0.0
  %1432 = vmatprep.subr.mxu0 0.0
  %1433 = vmatpush1.msra.mxu0 0.0
  %1434 = vmatprep.subr.mxu0 0.0
  %1435 = vmatpush1.msra.mxu0 0.0
  %1436 = vmatprep.subr.mxu0 0.0
  %1437 = vmatpush1.msra.mxu0 0.0
  %1438 = vmatprep.subr.mxu0 0.0
  %1439 = vmatpush1.msra.mxu0 0.0
  %1440 = vmatprep.subr.mxu0 0.0
  %1441 = vmatpush1.msra.mxu0 0.0
  %1442 = vmatprep.subr.mxu0 0.0
  %1443 = vmatpush1.msra.mxu0 0.0
  %1444 = vmatprep.subr.mxu0 0.0
  %1445 = vmatpush1.msra.mxu0 0.0
  %1446 = vmatprep.mubr.f32.mxu0 0.0
  %1447 = vmatmul.mubr.f32.gmra.mrb[0].mxu0 %v1277
  %v1448 = vpop.f32.mrb[0].mxu0
  %v1449 = vadd.f32 0.0, %v1448
  %v1450 = vpop.f32.mrb[0].mxu0
  %1451 = vmatprep.mubr.f32.mxu0 0.0
  %1452 = vmatmul.mubr.f32.gmra.mrb[0].mxu0 %v1280
  %v1453 = vpop.f32.mrb[0].mxu0
  %v1454 = vadd.f32 0.0, %v1453
  %v1455 = vpop.f32.mrb[0].mxu0
  %1456 = vmatprep.mubr.f32.mxu0 0.0
  %1457 = vmatmul.mubr.f32.gmra.mrb[0].mxu0 %v1283
  %v1458 = vpop.f32.mrb[0].mxu0
  %v1459 = vadd.f32 0.0, %v1458
  %v1460 = vpop.f32.mrb[0].mxu0
  %1461 = vmatprep.mubr.f32.mxu0 0.0
  %1462 = vmatmul.mubr.f32.gmra.mrb[0].mxu0 %v1286
  %v1463 = vpop.f32.mrb[0].mxu0
  %v1464 = vadd.f32 0.0, %v1463
  %v1465 = vpop.f32.mrb[0].mxu0
  %1466 = vdwg.mxu0
  %1467 = vmatprep.subr.mxu0 0.0
  %1468 = vmatpush1.msra.mxu0 %v1355
  %1469 = vmatprep.subr.mxu0 0.0
  %1470 = vmatpush1.msra.mxu0 %v1360
  %1471 = vmatprep.subr.mxu0 0.0
  %1472 = vmatpush1.msra.mxu0 %v1365
  %1473 = vmatprep.subr.mxu0 0.0
  %1474 = vmatpush1.msra.mxu0 %v1370
  %1475 = vmatprep.subr.mxu0 0.0
  %1476 = vmatpush1.msra.mxu0 0.0
  %1477 = vmatprep.subr.mxu0 0.0
  %1478 = vmatpush1.msra.mxu0 0.0
  %1479 = vmatprep.subr.mxu0 0.0
  %1480 = vmatpush1.msra.mxu0 0.0
  %1481 = vmatprep.subr.mxu0 0.0
  %1482 = vmatpush1.msra.mxu0 0.0
  %1483 = vmatprep.subr.mxu0 0.0
  %1484 = vmatpush1.msra.mxu0 0.0
  %1485 = vmatprep.subr.mxu0 0.0
  %1486 = vmatpush1.msra.mxu0 0.0
  %1487 = vmatprep.subr.mxu0 0.0
  %1488 = vmatpush1.msra.mxu0 0.0
  %1489 = vmatprep.subr.mxu0 0.0
  %1490 = vmatpush1.msra.mxu0 0.0
  %1491 = vmatprep.subr.mxu0 0.0
  %1492 = vmatpush1.msra.mxu0 0.0
  %1493 = vmatprep.subr.mxu0 0.0
  %1494 = vmatpush1.msra.mxu0 0.0
  %1495 = vmatprep.subr.mxu0 0.0
  %1496 = vmatpush1.msra.mxu0 0.0
  %1497 = vmatprep.subr.mxu0 0.0
  %1498 = vmatpush1.msra.mxu0 0.0
  %1499 = vmatprep.subr.mxu0 0.0
  %1500 = vmatpush1.msra.mxu0 0.0
  %1501 = vmatprep.subr.mxu0 0.0
  %1502 = vmatpush1.msra.mxu0 0.0
  %1503 = vmatprep.subr.mxu0 0.0
  %1504 = vmatpush1.msra.mxu0 0.0
  %1505 = vmatprep.subr.mxu0 0.0
  %1506 = vmatpush1.msra.mxu0 0.0
  %1507 = vmatprep.subr.mxu0 0.0
  %1508 = vmatpush1.msra.mxu0 0.0
  %1509 = vmatprep.subr.mxu0 0.0
  %1510 = vmatpush1.msra.mxu0 0.0
  %1511 = vmatprep.subr.mxu0 0.0
  %1512 = vmatpush1.msra.mxu0 0.0
  %1513 = vmatprep.subr.mxu0 0.0
  %1514 = vmatpush1.msra.mxu0 0.0
  %1515 = vmatprep.subr.mxu0 0.0
  %1516 = vmatpush1.msra.mxu0 0.0
  %1517 = vmatprep.subr.mxu0 0.0
  %1518 = vmatpush1.msra.mxu0 0.0
  %1519 = vmatprep.subr.mxu0 0.0
  %1520 = vmatpush1.msra.mxu0 0.0
  %1521 = vmatprep.subr.mxu0 0.0
  %1522 = vmatpush1.msra.mxu0 0.0
  %1523 = vmatprep.subr.mxu0 0.0
  %1524 = vmatpush1.msra.mxu0 0.0
  %1525 = vmatprep.subr.mxu0 0.0
  %1526 = vmatpush1.msra.mxu0 0.0
  %1527 = vmatprep.subr.mxu0 0.0
  %1528 = vmatpush1.msra.mxu0 0.0
  %1529 = vmatprep.subr.mxu0 0.0
  %1530 = vmatpush1.msra.mxu0 0.0
  %1531 = vmatprep.mubr.f32.mxu0 0.0
  %1532 = vmatmul.mubr.f32.gmra.mrb[0].mxu0 %v661
  %v1533 = vpop.f32.mrb[0].mxu0
  %v1534 = vadd.f32 %v1449, %v1533
  %v1535 = vpop.f32.mrb[0].mxu0
  %1536 = vmatprep.mubr.f32.mxu0 0.0
  %1537 = vmatmul.mubr.f32.gmra.mrb[0].mxu0 %v664
  %v1538 = vpop.f32.mrb[0].mxu0
  %v1539 = vadd.f32 %v1454, %v1538
  %v1540 = vpop.f32.mrb[0].mxu0
  %1541 = vmatprep.mubr.f32.mxu0 0.0
  %1542 = vmatmul.mubr.f32.gmra.mrb[0].mxu0 %v667
  %v1543 = vpop.f32.mrb[0].mxu0
  %v1544 = vadd.f32 %v1459, %v1543
  %v1545 = vpop.f32.mrb[0].mxu0
  %1546 = vmatprep.mubr.f32.mxu0 0.0
  %1547 = vmatmul.mubr.f32.gmra.mrb[0].mxu0 %v670
  %v1548 = vpop.f32.mrb[0].mxu0
  %v1549 = vadd.f32 %v1464, %v1548
  %v1550 = vpop.f32.mrb[0].mxu0
  %1551 = vdwg.mxu0
  %s1552 = scalar_lea.vmem %s7, 128
  %v1553 = vld [vmem:[%s1552] sm:$0xff]
  %v1554 = vld [vmem:[%s1552 + $0x8] sm:$0xff]
  %v1555 = vld [vmem:[%s1552 + $0x10] sm:$0xff]
  %v1556 = vld [vmem:[%s1552 + $0x18] sm:$0xff]
  %v1557 = vld [vmem:[%s1552 + $0x20] sm:$0xff]
  %v1558 = vld [vmem:[%s1552 + $0x28] sm:$0xff]
  %v1559 = vld [vmem:[%s1552 + $0x30] sm:$0xff]
  %v1560 = vld [vmem:[%s1552 + $0x38] sm:$0xff]
  %1561 = vmatprep.subr.mxu0 0.0
  %1562 = vmatpush1.msra.mxu0 %v1553
  %1563 = vmatprep.subr.mxu0 0.0
  %1564 = vmatpush1.msra.mxu0 %v1554
  %1565 = vmatprep.subr.mxu0 0.0
  %1566 = vmatpush1.msra.mxu0 %v1555
  %1567 = vmatprep.subr.mxu0 0.0
  %1568 = vmatpush1.msra.mxu0 %v1556
  %1569 = vmatprep.subr.mxu0 0.0
  %1570 = vmatpush1.msra.mxu0 %v1557
  %1571 = vmatprep.subr.mxu0 0.0
  %1572 = vmatpush1.msra.mxu0 %v1558
  %1573 = vmatprep.subr.mxu0 0.0
  %1574 = vmatpush1.msra.mxu0 %v1559
  %1575 = vmatprep.subr.mxu0 0.0
  %1576 = vmatpush1.msra.mxu0 %v1560
  %1577 = vmatprep.subr.mxu0 0.0
  %1578 = vmatpush1.msra.mxu0 0.0
  %1579 = vmatprep.subr.mxu0 0.0
  %1580 = vmatpush1.msra.mxu0 0.0
  %1581 = vmatprep.subr.mxu0 0.0
  %1582 = vmatpush1.msra.mxu0 0.0
  %1583 = vmatprep.subr.mxu0 0.0
  %1584 = vmatpush1.msra.mxu0 0.0
  %1585 = vmatprep.subr.mxu0 0.0
  %1586 = vmatpush1.msra.mxu0 0.0
  %1587 = vmatprep.subr.mxu0 0.0
  %1588 = vmatpush1.msra.mxu0 0.0
  %1589 = vmatprep.subr.mxu0 0.0
  %1590 = vmatpush1.msra.mxu0 0.0
  %1591 = vmatprep.subr.mxu0 0.0
  %1592 = vmatpush1.msra.mxu0 0.0
  %1593 = vmatprep.subr.mxu0 0.0
  %1594 = vmatpush1.msra.mxu0 0.0
  %1595 = vmatprep.subr.mxu0 0.0
  %1596 = vmatpush1.msra.mxu0 0.0
  %1597 = vmatprep.subr.mxu0 0.0
  %1598 = vmatpush1.msra.mxu0 0.0
  %1599 = vmatprep.subr.mxu0 0.0
  %1600 = vmatpush1.msra.mxu0 0.0
  %1601 = vmatprep.subr.mxu0 0.0
  %1602 = vmatpush1.msra.mxu0 0.0
  %1603 = vmatprep.subr.mxu0 0.0
  %1604 = vmatpush1.msra.mxu0 0.0
  %1605 = vmatprep.subr.mxu0 0.0
  %1606 = vmatpush1.msra.mxu0 0.0
  %1607 = vmatprep.subr.mxu0 0.0
  %1608 = vmatpush1.msra.mxu0 0.0
  %1609 = vmatprep.subr.mxu0 0.0
  %1610 = vmatpush1.msra.mxu0 0.0
  %1611 = vmatprep.subr.mxu0 0.0
  %1612 = vmatpush1.msra.mxu0 0.0
  %1613 = vmatprep.subr.mxu0 0.0
  %1614 = vmatpush1.msra.mxu0 0.0
  %1615 = vmatprep.subr.mxu0 0.0
  %1616 = vmatpush1.msra.mxu0 0.0
  %1617 = vmatprep.subr.mxu0 0.0
  %1618 = vmatpush1.msra.mxu0 0.0
  %1619 = vmatprep.subr.mxu0 0.0
  %1620 = vmatpush1.msra.mxu0 0.0
  %1621 = vmatprep.subr.mxu0 0.0
  %1622 = vmatpush1.msra.mxu0 0.0
  %1623 = vmatprep.subr.mxu0 0.0
  %1624 = vmatpush1.msra.mxu0 0.0
  %1625 = vmatprep.mubr.f32.mxu0 0.0
  %1626 = vmatmul.mubr.f32.gmra.mrb[0].mxu0 %v1277
  %v1627 = vpop.f32.mrb[0].mxu0
  %v1628 = vadd.f32 0.0, %v1627
  %v1629 = vpop.f32.mrb[0].mxu0
  %1630 = vmatprep.mubr.f32.mxu0 0.0
  %1631 = vmatmul.mubr.f32.gmra.mrb[0].mxu0 %v1280
  %v1632 = vpop.f32.mrb[0].mxu0
  %v1633 = vadd.f32 0.0, %v1632
  %v1634 = vpop.f32.mrb[0].mxu0
  %1635 = vmatprep.mubr.f32.mxu0 0.0
  %1636 = vmatmul.mubr.f32.gmra.mrb[0].mxu0 %v1283
  %v1637 = vpop.f32.mrb[0].mxu0
  %v1638 = vadd.f32 0.0, %v1637
  %v1639 = vpop.f32.mrb[0].mxu0
  %1640 = vmatprep.mubr.f32.mxu0 0.0
  %1641 = vmatmul.mubr.f32.gmra.mrb[0].mxu0 %v1286
  %v1642 = vpop.f32.mrb[0].mxu0
  %v1643 = vadd.f32 0.0, %v1642
  %v1644 = vpop.f32.mrb[0].mxu0
  %1645 = vdwg.mxu0
  %1646 = vmatprep.subr.mxu0 0.0
  %1647 = vmatpush1.msra.mxu0 %v1628
  %1648 = vmatprep.subr.mxu0 0.0
  %1649 = vmatpush1.msra.mxu0 %v1633
  %1650 = vmatprep.subr.mxu0 0.0
  %1651 = vmatpush1.msra.mxu0 %v1638
  %1652 = vmatprep.subr.mxu0 0.0
  %1653 = vmatpush1.msra.mxu0 %v1643
  %1654 = vmatprep.subr.mxu0 0.0
  %1655 = vmatpush1.msra.mxu0 0.0
  %1656 = vmatprep.subr.mxu0 0.0
  %1657 = vmatpush1.msra.mxu0 0.0
  %1658 = vmatprep.subr.mxu0 0.0
  %1659 = vmatpush1.msra.mxu0 0.0
  %1660 = vmatprep.subr.mxu0 0.0
  %1661 = vmatpush1.msra.mxu0 0.0
  %1662 = vmatprep.subr.mxu0 0.0
  %1663 = vmatpush1.msra.mxu0 0.0
  %1664 = vmatprep.subr.mxu0 0.0
  %1665 = vmatpush1.msra.mxu0 0.0
  %1666 = vmatprep.subr.mxu0 0.0
  %1667 = vmatpush1.msra.mxu0 0.0
  %1668 = vmatprep.subr.mxu0 0.0
  %1669 = vmatpush1.msra.mxu0 0.0
  %1670 = vmatprep.subr.mxu0 0.0
  %1671 = vmatpush1.msra.mxu0 0.0
  %1672 = vmatprep.subr.mxu0 0.0
  %1673 = vmatpush1.msra.mxu0 0.0
  %1674 = vmatprep.subr.mxu0 0.0
  %1675 = vmatpush1.msra.mxu0 0.0
  %1676 = vmatprep.subr.mxu0 0.0
  %1677 = vmatpush1.msra.mxu0 0.0
  %1678 = vmatprep.subr.mxu0 0.0
  %1679 = vmatpush1.msra.mxu0 0.0
  %1680 = vmatprep.subr.mxu0 0.0
  %1681 = vmatpush1.msra.mxu0 0.0
  %1682 = vmatprep.subr.mxu0 0.0
  %1683 = vmatpush1.msra.mxu0 0.0
  %1684 = vmatprep.subr.mxu0 0.0
  %1685 = vmatpush1.msra.mxu0 0.0
  %1686 = vmatprep.subr.mxu0 0.0
  %1687 = vmatpush1.msra.mxu0 0.0
  %1688 = vmatprep.subr.mxu0 0.0
  %1689 = vmatpush1.msra.mxu0 0.0
  %1690 = vmatprep.subr.mxu0 0.0
  %1691 = vmatpush1.msra.mxu0 0.0
  %1692 = vmatprep.subr.mxu0 0.0
  %1693 = vmatpush1.msra.mxu0 0.0
  %1694 = vmatprep.subr.mxu0 0.0
  %1695 = vmatpush1.msra.mxu0 0.0
  %1696 = vmatprep.subr.mxu0 0.0
  %1697 = vmatpush1.msra.mxu0 0.0
  %1698 = vmatprep.subr.mxu0 0.0
  %1699 = vmatpush1.msra.mxu0 0.0
  %1700 = vmatprep.subr.mxu0 0.0
  %1701 = vmatpush1.msra.mxu0 0.0
  %1702 = vmatprep.subr.mxu0 0.0
  %1703 = vmatpush1.msra.mxu0 0.0
  %1704 = vmatprep.subr.mxu0 0.0
  %1705 = vmatpush1.msra.mxu0 0.0
  %1706 = vmatprep.subr.mxu0 0.0
  %1707 = vmatpush1.msra.mxu0 0.0
  %1708 = vmatprep.subr.mxu0 0.0
  %1709 = vmatpush1.msra.mxu0 0.0
  %1710 = vmatprep.mubr.f32.mxu0 0.0
  %1711 = vmatmul.mubr.f32.gmra.mrb[0].mxu0 %v951
  %v1712 = vpop.f32.mrb[0].mxu0
  %v1713 = vadd.f32 0.0, %v1712
  %v1714 = vpop.f32.mrb[0].mxu0
  %1715 = vmatprep.mubr.f32.mxu0 0.0
  %1716 = vmatmul.mubr.f32.gmra.mrb[0].mxu0 %v954
  %v1717 = vpop.f32.mrb[0].mxu0
  %v1718 = vadd.f32 0.0, %v1717
  %v1719 = vpop.f32.mrb[0].mxu0
  %1720 = vmatprep.mubr.f32.mxu0 0.0
  %1721 = vmatmul.mubr.f32.gmra.mrb[0].mxu0 %v957
  %v1722 = vpop.f32.mrb[0].mxu0
  %v1723 = vadd.f32 0.0, %v1722
  %v1724 = vpop.f32.mrb[0].mxu0
  %1725 = vmatprep.mubr.f32.mxu0 0.0
  %1726 = vmatmul.mubr.f32.gmra.mrb[0].mxu0 %v960
  %v1727 = vpop.f32.mrb[0].mxu0
  %v1728 = vadd.f32 0.0, %v1727
  %v1729 = vpop.f32.mrb[0].mxu0
  %1730 = vdwg.mxu0
  %v1731 = vadd.f32 %v1534, %v1713
  %v1732 = vadd.f32 %v1539, %v1718
  %v1733 = vadd.f32 %v1544, %v1723
  %v1734 = vadd.f32 %v1549, %v1728
  %v1735 = vadd.f32 %v1731, %v1732
  %v1736 = vadd.f32 %v1735, %v1733
  %v1737 = vadd.f32 %v1736, %v1734
  %v1738 = vrot.slane %v1737, 4
  %v1739 = vadd.f32 %v1737, %v1738
  %v1740 = vrot.slane %v1739, 2
  %v1741 = vadd.f32 %v1739, %v1740
  %v1742 = vrot.slane %v1741, 1
  %v1743 = vadd.f32 %v1741, %v1742
  %v1744 = vmul.f32 %v1731, %v1731
  %v1745 = vmul.f32 %v1732, %v1732
  %v1746 = vmul.f32 %v1733, %v1733
  %v1747 = vmul.f32 %v1734, %v1734
  %v1748 = vadd.f32 %v1744, %v1745
  %v1749 = vadd.f32 %v1748, %v1746
  %v1750 = vadd.f32 %v1749, %v1747
  %v1751 = vrot.slane %v1750, 4
  %v1752 = vadd.f32 %v1750, %v1751
  %v1753 = vrot.slane %v1752, 2
  %v1754 = vadd.f32 %v1752, %v1753
  %v1755 = vrot.slane %v1754, 1
  %v1756 = vadd.f32 %v1754, %v1755
  %v1757 = vld [vmem:[%s11] sm:$0xff]
  %v1758 = vld [vmem:[%s11 + $0x8] sm:$0xff]
  %v1759 = vld [vmem:[%s11 + $0x10] sm:$0xff]
  %v1760 = vld [vmem:[%s11 + $0x18] sm:$0xff]
  %v1761 = vld [vmem:[%s11 + $0x20] sm:$0xff]
  %v1762 = vld [vmem:[%s11 + $0x28] sm:$0xff]
  %v1763 = vld [vmem:[%s11 + $0x30] sm:$0xff]
  %v1764 = vld [vmem:[%s11 + $0x38] sm:$0xff]
  %v1765 = vld [vmem:[%s11 + $0x40] sm:$0xff]
  %v1766 = vld [vmem:[%s11 + $0x48] sm:$0xff]
  %v1767 = vld [vmem:[%s11 + $0x50] sm:$0xff]
  %v1768 = vld [vmem:[%s11 + $0x58] sm:$0xff]
  %v1769 = vld [vmem:[%s11 + $0x60] sm:$0xff]
  %v1770 = vld [vmem:[%s11 + $0x68] sm:$0xff]
  %v1771 = vld [vmem:[%s11 + $0x70] sm:$0xff]
  %v1772 = vld [vmem:[%s11 + $0x78] sm:$0xff]
  %1773 = vmatprep.subr.mxu0 0.0
  %1774 = vmatpush1.msra.mxu0 %v1757
  %1775 = vmatprep.subr.mxu0 0.0
  %1776 = vmatpush1.msra.mxu0 %v1758
  %1777 = vmatprep.subr.mxu0 0.0
  %1778 = vmatpush1.msra.mxu0 %v1759
  %1779 = vmatprep.subr.mxu0 0.0
  %1780 = vmatpush1.msra.mxu0 %v1760
  %1781 = vmatprep.subr.mxu0 0.0
  %1782 = vmatpush1.msra.mxu0 %v1761
  %1783 = vmatprep.subr.mxu0 0.0
  %1784 = vmatpush1.msra.mxu0 %v1762
  %1785 = vmatprep.subr.mxu0 0.0
  %1786 = vmatpush1.msra.mxu0 %v1763
  %1787 = vmatprep.subr.mxu0 0.0
  %1788 = vmatpush1.msra.mxu0 %v1764
  %1789 = vmatprep.subr.mxu0 0.0
  %1790 = vmatpush1.msra.mxu0 %v1765
  %1791 = vmatprep.subr.mxu0 0.0
  %1792 = vmatpush1.msra.mxu0 %v1766
  %1793 = vmatprep.subr.mxu0 0.0
  %1794 = vmatpush1.msra.mxu0 %v1767
  %1795 = vmatprep.subr.mxu0 0.0
  %1796 = vmatpush1.msra.mxu0 %v1768
  %1797 = vmatprep.subr.mxu0 0.0
  %1798 = vmatpush1.msra.mxu0 %v1769
  %1799 = vmatprep.subr.mxu0 0.0
  %1800 = vmatpush1.msra.mxu0 %v1770
  %1801 = vmatprep.subr.mxu0 0.0
  %1802 = vmatpush1.msra.mxu0 %v1771
  %1803 = vmatprep.subr.mxu0 0.0
  %1804 = vmatpush1.msra.mxu0 %v1772
  %1805 = vmatprep.subr.mxu0 0.0
  %1806 = vmatpush1.msra.mxu0 0.0
  %1807 = vmatprep.subr.mxu0 0.0
  %1808 = vmatpush1.msra.mxu0 0.0
  %1809 = vmatprep.subr.mxu0 0.0
  %1810 = vmatpush1.msra.mxu0 0.0
  %1811 = vmatprep.subr.mxu0 0.0
  %1812 = vmatpush1.msra.mxu0 0.0
  %1813 = vmatprep.subr.mxu0 0.0
  %1814 = vmatpush1.msra.mxu0 0.0
  %1815 = vmatprep.subr.mxu0 0.0
  %1816 = vmatpush1.msra.mxu0 0.0
  %1817 = vmatprep.subr.mxu0 0.0
  %1818 = vmatpush1.msra.mxu0 0.0
  %1819 = vmatprep.subr.mxu0 0.0
  %1820 = vmatpush1.msra.mxu0 0.0
  %1821 = vmatprep.subr.mxu0 0.0
  %1822 = vmatpush1.msra.mxu0 0.0
  %1823 = vmatprep.subr.mxu0 0.0
  %1824 = vmatpush1.msra.mxu0 0.0
  %1825 = vmatprep.subr.mxu0 0.0
  %1826 = vmatpush1.msra.mxu0 0.0
  %1827 = vmatprep.subr.mxu0 0.0
  %1828 = vmatpush1.msra.mxu0 0.0
  %1829 = vmatprep.subr.mxu0 0.0
  %1830 = vmatpush1.msra.mxu0 0.0
  %1831 = vmatprep.subr.mxu0 0.0
  %1832 = vmatpush1.msra.mxu0 0.0
  %1833 = vmatprep.subr.mxu0 0.0
  %1834 = vmatpush1.msra.mxu0 0.0
  %1835 = vmatprep.subr.mxu0 0.0
  %1836 = vmatpush1.msra.mxu0 0.0
  %1837 = vmatprep.mubr.f32.mxu0 0.0
  %1838 = vmatmul.mubr.f32.gmra.mrb[0].mxu0 %v1743
  %v1839 = vpop.f32.mrb[0].mxu0
  %v1840 = vadd.f32 0.0, %v1839
  %v1841 = vpop.f32.mrb[0].mxu0
  %1842 = vdwg.mxu0
  %v1843 = vmul.f32 %v1840, 0.001953125
  %1844 = vmatprep.subr.mxu0 0.0
  %1845 = vmatpush1.msra.mxu0 %v1757
  %1846 = vmatprep.subr.mxu0 0.0
  %1847 = vmatpush1.msra.mxu0 %v1758
  %1848 = vmatprep.subr.mxu0 0.0
  %1849 = vmatpush1.msra.mxu0 %v1759
  %1850 = vmatprep.subr.mxu0 0.0
  %1851 = vmatpush1.msra.mxu0 %v1760
  %1852 = vmatprep.subr.mxu0 0.0
  %1853 = vmatpush1.msra.mxu0 %v1761
  %1854 = vmatprep.subr.mxu0 0.0
  %1855 = vmatpush1.msra.mxu0 %v1762
  %1856 = vmatprep.subr.mxu0 0.0
  %1857 = vmatpush1.msra.mxu0 %v1763
  %1858 = vmatprep.subr.mxu0 0.0
  %1859 = vmatpush1.msra.mxu0 %v1764
  %1860 = vmatprep.subr.mxu0 0.0
  %1861 = vmatpush1.msra.mxu0 %v1765
  %1862 = vmatprep.subr.mxu0 0.0
  %1863 = vmatpush1.msra.mxu0 %v1766
  %1864 = vmatprep.subr.mxu0 0.0
  %1865 = vmatpush1.msra.mxu0 %v1767
  %1866 = vmatprep.subr.mxu0 0.0
  %1867 = vmatpush1.msra.mxu0 %v1768
  %1868 = vmatprep.subr.mxu0 0.0
  %1869 = vmatpush1.msra.mxu0 %v1769
  %1870 = vmatprep.subr.mxu0 0.0
  %1871 = vmatpush1.msra.mxu0 %v1770
  %1872 = vmatprep.subr.mxu0 0.0
  %1873 = vmatpush1.msra.mxu0 %v1771
  %1874 = vmatprep.subr.mxu0 0.0
  %1875 = vmatpush1.msra.mxu0 %v1772
  %1876 = vmatprep.subr.mxu0 0.0
  %1877 = vmatpush1.msra.mxu0 0.0
  %1878 = vmatprep.subr.mxu0 0.0
  %1879 = vmatpush1.msra.mxu0 0.0
  %1880 = vmatprep.subr.mxu0 0.0
  %1881 = vmatpush1.msra.mxu0 0.0
  %1882 = vmatprep.subr.mxu0 0.0
  %1883 = vmatpush1.msra.mxu0 0.0
  %1884 = vmatprep.subr.mxu0 0.0
  %1885 = vmatpush1.msra.mxu0 0.0
  %1886 = vmatprep.subr.mxu0 0.0
  %1887 = vmatpush1.msra.mxu0 0.0
  %1888 = vmatprep.subr.mxu0 0.0
  %1889 = vmatpush1.msra.mxu0 0.0
  %1890 = vmatprep.subr.mxu0 0.0
  %1891 = vmatpush1.msra.mxu0 0.0
  %1892 = vmatprep.subr.mxu0 0.0
  %1893 = vmatpush1.msra.mxu0 0.0
  %1894 = vmatprep.subr.mxu0 0.0
  %1895 = vmatpush1.msra.mxu0 0.0
  %1896 = vmatprep.subr.mxu0 0.0
  %1897 = vmatpush1.msra.mxu0 0.0
  %1898 = vmatprep.subr.mxu0 0.0
  %1899 = vmatpush1.msra.mxu0 0.0
  %1900 = vmatprep.subr.mxu0 0.0
  %1901 = vmatpush1.msra.mxu0 0.0
  %1902 = vmatprep.subr.mxu0 0.0
  %1903 = vmatpush1.msra.mxu0 0.0
  %1904 = vmatprep.subr.mxu0 0.0
  %1905 = vmatpush1.msra.mxu0 0.0
  %1906 = vmatprep.subr.mxu0 0.0
  %1907 = vmatpush1.msra.mxu0 0.0
  %1908 = vmatprep.mubr.f32.mxu0 0.0
  %1909 = vmatmul.mubr.f32.gmra.mrb[0].mxu0 %v1756
  %v1910 = vpop.f32.mrb[0].mxu0
  %v1911 = vadd.f32 0.0, %v1910
  %v1912 = vpop.f32.mrb[0].mxu0
  %1913 = vdwg.mxu0
  %v1914 = vmul.f32 %v1911, 0.001953125
  %v1915 = vmul.f32 %v1843, %v1843
  %v1916 = vsub.f32 %v1914, %v1915
  %v1917 = vadd.f32 %v1916, 1e-05
  %v1918 = vrsqrt.pop %v1917
  %v1919 = vld [vmem:[%s12] sm:$0x1]
  %v1920 = vmul.f32 %v1918, %v1919
  %v1921 = vld [vmem:[%s13] sm:$0x1]
  %v1922 = vmul.f32 %v1843, %v1920
  %v1923 = vsub.f32 %v1921, %v1922
  %v1924 = vlaneseq
  %v1925 = vshrl.u32 %v1924, 7
  %v1926 = vsub.s32 0, %v1925
  %v1927 = vrot.slane %v1920, %v1926
  %v1928 = vmul.f32 %v1731, %v1927
  %v1929 = vmul.f32 %v1732, %v1927
  %v1930 = vmul.f32 %v1733, %v1927
  %v1931 = vmul.f32 %v1734, %v1927
  %v1933 = vlaneseq
  %v1934 = vshrl.u32 %v1933, 7
  %v1935 = vsub.s32 0, %v1934
  %v1936 = vrot.slane %v1923, %v1935
  %v1938 = vadd.f32 %v1928, %v1936
  %v1939 = vadd.f32 %v1929, %v1936
  %v1940 = vadd.f32 %v1930, %v1936
  %v1941 = vadd.f32 %v1931, %v1936
  %v1942 = vmax.f32 %v1938, 0.0
  %v1943 = vmax.f32 %v1939, 0.0
  %v1944 = vmax.f32 %v1940, 0.0
  %v1945 = vmax.f32 %v1941, 0.0
  %1946 = vst [vmem:[%s14] sm:$0xff] %v1942
  %1947 = vst [vmem:[%s14 + $0x8] sm:$0xff] %v1943
  %1948 = vst [vmem:[%s14 + $0x10] sm:$0xff] %v1944
  %1949 = vst [vmem:[%s14 + $0x18] sm:$0xff] %v1945
  // Predicated region
  $region58: #{up_forward.1} parent=0 // pred_check
    _
  $region59: #{up_forward.1} parent=0 // pred_check_branch
    %1951 = sbr.rel (0) target = $region61
  $region60: #{up_forward.1} parent=0 // pred_region
    _
  $region61: #{up_forward.1} parent=0 // pred_fallthru
    _
  // Predicated region
  $region62: #{up_forward.1} parent=0 // pred_check
    _
  $region63: #{up_forward.1} parent=0 // pred_check_branch
    %1953 = sbr.rel (0) target = $region65
  $region64: #{up_forward.1} parent=0 // pred_region
    _
  $region65: #{up_forward.1} parent=0 // pred_fallthru
    _

</llo_original>
